<compile_context>
chip_gen: v7x
topology: tpu7x:2x2x1
jax: 0.10.0
libtpu: 0.0.40
codegen_flags: <defaults>
</compile_context>

<pallas_src>
import math

import jax
import jax.numpy as jnp
from jax.experimental import pallas as pl
from jax.experimental.pallas import tpu as pltpu

# ----- small, module-consistent hyperparameters -----
NTOKEN  = 50     # vocab size
NINP    = 32     # embedding dim E
NHEAD   = 4      # attention heads
NHID    = 64     # FFN hidden dim
NLAYERS = 2      # encoder layers
NLABEL  = 3      # output labels
SEQ     = 8      # sequence length
BATCH   = 2      # batch size
HD      = NINP // NHEAD
BS      = BATCH * SEQ
LN_EPS  = 1e-5
NEG_INF = -1e30                      # finite stand-in for -inf in the additive mask
SCALE   = 1.0 / math.sqrt(HD)
SQRT_E  = math.sqrt(NINP)

VMEM_SPEC = pl.BlockSpec(memory_space=pltpu.MemorySpace.VMEM)
N_INPUTS = 14


def _matmul_nt(a, w):
    """a[M, K] @ w[N, K].T -> [M, N]  (PyTorch Linear layout, no explicit transpose)."""
    return jax.lax.dot_general(a, w, (((1,), (1,)), ((), ())),
                               preferred_element_type=jnp.float32)


def _layer_norm(v, w, b):
    mu = jnp.mean(v, axis=-1, keepdims=True)
    var = jnp.mean((v - mu) ** 2, axis=-1, keepdims=True)
    return (v - mu) * jax.lax.rsqrt(var + LN_EPS) * w + b


def _stack_over_heads(t):
    """Tile t[BS, E] NHEAD times along sublanes -> [NHEAD*BS, E]; row h*BS+j = t[j]."""
    return jnp.broadcast_to(t[None, :, :], (NHEAD, BS, NINP)).reshape(NHEAD * BS, NINP)


def _encoder_layer(x, add_mask, hm_rep, wqkv, wo, w1, w2, b):
    """One post-norm TransformerEncoderLayer on flattened activations x[BS, E]."""
    E = NINP
    # fused QKV projection (q rows / q bias pre-scaled by 1/sqrt(head_dim) host-side)
    qkv = _matmul_nt(x, wqkv) + b[0:1, :]                      # [BS, 3E]
    q = qkv[:, 0:E]
    k = qkv[:, E:2 * E]
    v = qkv[:, 2 * E:3 * E]

    # head-masked K/V stacks: row h*BS+j holds k[j]/v[j] restricted to head h's features
    k_st = _stack_over_heads(k) * hm_rep                       # [H*BS, E]
    v_st = _stack_over_heads(v) * hm_rep                       # [H*BS, E]

    # ALL (batch, head) attention scores in ONE matmul; additive mask is block-diagonal
    # over batch and carries the key-padding -1e30 terms (host precomputed, shared layers)
    s = _matmul_nt(q, k_st) + add_mask                         # [BS, H*BS]
    s = s - jnp.max(s, axis=-1, keepdims=True)                 # one row-max per layer
    p = jnp.exp(s)
    # per-head softmax denominators broadcast onto each head's feature lanes, and the
    # unnormalized context -- both as single [BS,H*BS]@[H*BS,E] matmuls
    denom = jnp.dot(p, hm_rep, preferred_element_type=jnp.float32)   # [BS, E]
    ctx = jnp.dot(p, v_st, preferred_element_type=jnp.float32)       # [BS, E]
    ctx = ctx * pl.reciprocal(denom, approx=False)

    attn = _matmul_nt(ctx, wo) + b[1:2, 0:E]
    x1 = _layer_norm(x + attn, b[2:3, 0:E], b[3:4, 0:E])

    # FFN (ReLU)
    h1 = jnp.maximum(_matmul_nt(x1, w1) + b[4:5, 0:NHID], 0.0)       # [BS, NHID]
    ff = _matmul_nt(h1, w2) + b[5:6, 0:E]
    return _layer_norm(x1 + ff, b[6:7, 0:E], b[7:8, 0:E])


def fused_forward_kernel(onehot_ref, pe_ref, mask_ref, hmrep_ref, emb_ref,
                         wqkv_ref, wo_ref, w1_ref, w2_ref, bln_ref,
                         dw1_ref, db1_ref, dw2_ref, db2_ref, o_ref):
    # embedding gather = one-hot @ (sqrt(E)-prescaled) table, then pre-tiled pos-encoding
    x = jnp.dot(onehot_ref[...], emb_ref[...], preferred_element_type=jnp.float32)
    x = x + pe_ref[...]                                        # [BS, E]

    add_mask = mask_ref[...]                                   # [BS, H*BS]
    hm_rep = hmrep_ref[...]                                    # [H*BS, E]

    # both encoder layers, fully in-kernel (static unrolled loop, layer via leading index)
    for l in range(NLAYERS):
        x = _encoder_layer(x, add_mask, hm_rep,
                           wqkv_ref[l], wo_ref[l], w1_ref[l], w2_ref[l], bln_ref[l])

    # [max | min | mean]-over-seq pooling (includes padded positions, like torch)
    x3 = x.reshape(BATCH, SEQ, NINP)
    mx = jnp.max(x3, axis=1)                                   # [B, E]
    mn = jnp.min(x3, axis=1)
    mean = jnp.mean(x3, axis=1)

    # decoder MLP: Linear(3E,E) split host-side into max/min/mean blocks -> no lane concat
    h = (_matmul_nt(mx, dw1_ref[0]) + _matmul_nt(mn, dw1_ref[1])
         + _matmul_nt(mean, dw1_ref[2]) + db1_ref[...])
    h = jnp.maximum(h, 0.0)                                    # [B, E]
    o_ref[...] = _matmul_nt(h, dw2_ref[...]) + db2_ref[...]    # [B, NLABEL]


# ------------------------------------------------------------------
# JAX wrapper: one pallas_call for the whole forward pass
# ------------------------------------------------------------------
@jax.jit
def forward(src, pad_mask, params):
    # src: [S, B] int32 token ids (seq-first, like the PyTorch module); pad_mask: [B, S] bool
    tok = jnp.transpose(src).reshape(-1).astype(jnp.int32)                  # [BS] batch-major
    onehot = (tok[:, None] == jnp.arange(NTOKEN, dtype=jnp.int32)[None, :]
              ).astype(jnp.float32)                                         # [BS, NTOKEN]
    pe_bs = jnp.tile(params["pe"], (BATCH, 1))                              # [BS, E]

    # additive attention mask [BS, H*BS]: block-diagonal over batch + key-padding (-1e30)
    pad_add = jnp.where(pad_mask, NEG_INF, 0.0).astype(jnp.float32)         # [B, S]
    key_add = pad_add.reshape(-1)                                           # [BS]
    bi = jnp.repeat(jnp.arange(BATCH, dtype=jnp.int32), SEQ)                # [BS]
    base = jnp.where(bi[:, None] == bi[None, :], key_add[None, :], NEG_INF) # [BS, BS]
    add_mask = jnp.tile(base, (1, NHEAD))                                   # [BS, H*BS]

    return pl.pallas_call(
        fused_forward_kernel,
        out_shape=jax.ShapeDtypeStruct((BATCH, NLABEL), jnp.float32),
        in_specs=[VMEM_SPEC] * N_INPUTS,
        out_specs=VMEM_SPEC,
    )(onehot, pe_bs, add_mask, params["hm_rep"], params["emb"],
      params["wqkv"], params["wo"], params["w1"], params["w2"], params["bln"],
      params["dw1"], params["db1"], params["dw2"], params["db2"])


# ------------------------------------------------------------------
# Parameter init (constants folded, layouts already kernel-friendly)
# ------------------------------------------------------------------
def init_params(key):
    ks = iter(jax.random.split(key, 64))

    def nrm(shape, scale=0.05):
        return (scale * jax.random.normal(next(ks), shape)).astype(jnp.float32)

    # embedding (padding_idx = 1 row zeroed); sqrt(E) folded in host-side
    emb = nrm((NTOKEN, NINP), 1.0)
    emb = emb.at[1].set(0.0) * SQRT_E

    # sinusoidal positional encoding [S, E]
    pos = jnp.arange(SEQ, dtype=jnp.float32)[:, None]
    div = jnp.exp(jnp.arange(0, NINP, 2, dtype=jnp.float32) * (-math.log(10000.0) / NINP))
    pe = jnp.zeros((SEQ, NINP), jnp.float32)
    pe = pe.at[:, 0::2].set(jnp.sin(pos * div)).at[:, 1::2].set(jnp.cos(pos * div))

    wqkv_l, wo_l, w1_l, w2_l, bln_l = [], [], [], [], []
    for _ in range(NLAYERS):
        wqkv = nrm((3 * NINP, NINP)); bqkv = nrm((3 * NINP,))
        # fold 1/sqrt(head_dim) into the q projection rows / bias
        wqkv = wqkv.at[0:NINP].multiply(SCALE)
        bqkv = bqkv.at[0:NINP].multiply(SCALE)
        wo = nrm((NINP, NINP)); bo = nrm((NINP,))
        w1 = nrm((NHID, NINP)); b1 = nrm((NHID,))
        w2 = nrm((NINP, NHID)); b2 = nrm((NINP,))
        ln1w = jnp.ones((NINP,), jnp.float32); ln1b = jnp.zeros((NINP,), jnp.float32)
        ln2w = jnp.ones((NINP,), jnp.float32); ln2b = jnp.zeros((NINP,), jnp.float32)
        # per-layer bias / LayerNorm pack: [8, 3E]
        B = jnp.zeros((8, 3 * NINP), jnp.float32)
        B = B.at[0, :].set(bqkv)
        B = B.at[1, 0:NINP].set(bo)
        B = B.at[2, 0:NINP].set(ln1w)
        B = B.at[3, 0:NINP].set(ln1b)
        B = B.at[4, 0:NHID].set(b1)
        B = B.at[5, 0:NINP].set(b2)
        B = B.at[6, 0:NINP].set(ln2w)
        B = B.at[7, 0:NINP].set(ln2b)
        wqkv_l.append(wqkv); wo_l.append(wo); w1_l.append(w1); w2_l.append(w2); bln_l.append(B)

    # decoder: Linear(3E, E) split into (max | min | mean) blocks, then Linear(E, NLABEL)
    dec_w1 = nrm((NINP, 3 * NINP)); dec_b1 = nrm((NINP,))
    dec_w2 = nrm((NLABEL, NINP));   dec_b2 = nrm((NLABEL,))
    dw1 = jnp.stack([dec_w1[:, i * NINP:(i + 1) * NINP] for i in range(3)], axis=0)

    # data-independent head-indicator repeated per key row: [H*BS, E]
    head_of_feat = jnp.repeat(jnp.arange(NHEAD), HD)                             # [E]
    hm = (jnp.arange(NHEAD)[:, None] == head_of_feat[None, :]).astype(jnp.float32)  # [H, E]
    hm_rep = jnp.repeat(hm, BS, axis=0)                                          # [H*BS, E]

    return dict(emb=emb, pe=pe, hm_rep=hm_rep,
                wqkv=jnp.stack(wqkv_l), wo=jnp.stack(wo_l),
                w1=jnp.stack(w1_l), w2=jnp.stack(w2_l), bln=jnp.stack(bln_l),
                dw1=dw1, db1=dec_b1[None, :], dw2=dec_w2, db2=dec_b2[None, :])


if __name__ == "__main__":
    key = jax.random.PRNGKey(0)
    kp, kt = jax.random.split(key)
    params = init_params(kp)

    # tokens in [2, NTOKEN) so only the explicitly-set positions are padding (=1)
    src = jax.random.randint(kt, (SEQ, BATCH), 2, NTOKEN, dtype=jnp.int32)
    src = src.at[-2:, 1].set(1)                 # pad the tail of batch element 1
    pad_mask = (src.T == 1)                     # [B, S] True where padded

    out = jax.block_until_ready(forward(src, pad_mask, params))
    assert out.shape == (BATCH, NLABEL), out.shape
    assert bool(jnp.all(jnp.isfinite(out)))
    print("KERNEL_OK")
</pallas_src>

<mosaic_0001>
module attributes {stable_mosaic.version = 11 : i64} {
  func.func @fused_forward_kernel(%arg0: memref<16x50xf32, #tpu.memory_space<vmem>>, %arg1: memref<16x32xf32, #tpu.memory_space<vmem>>, %arg2: memref<16x64xf32, #tpu.memory_space<vmem>>, %arg3: memref<64x32xf32, #tpu.memory_space<vmem>>, %arg4: memref<50x32xf32, #tpu.memory_space<vmem>>, %arg5: memref<2x96x32xf32, #tpu.memory_space<vmem>>, %arg6: memref<2x32x32xf32, #tpu.memory_space<vmem>>, %arg7: memref<2x64x32xf32, #tpu.memory_space<vmem>>, %arg8: memref<2x32x64xf32, #tpu.memory_space<vmem>>, %arg9: memref<2x8x96xf32, #tpu.memory_space<vmem>>, %arg10: memref<3x32x32xf32, #tpu.memory_space<vmem>>, %arg11: memref<1x32xf32, #tpu.memory_space<vmem>>, %arg12: memref<3x32xf32, #tpu.memory_space<vmem>>, %arg13: memref<1x3xf32, #tpu.memory_space<vmem>>, %arg14: memref<2x3xf32, #tpu.memory_space<vmem>>) attributes {dimension_semantics = [], scalar_prefetch = 0 : i64, scratch_operands = 0 : i64, tpu.core_type = #tpu.core_type<tc>} {
    %c0 = arith.constant 0 : index
    %c0_0 = arith.constant 0 : index
    %0 = vector.load %arg0[%c0, %c0_0] : memref<16x50xf32, #tpu.memory_space<vmem>>, vector<16x50xf32>
    %c0_1 = arith.constant 0 : index
    %c0_2 = arith.constant 0 : index
    %1 = vector.load %arg4[%c0_1, %c0_2] : memref<50x32xf32, #tpu.memory_space<vmem>>, vector<50x32xf32>
    %cst = arith.constant dense<0.000000e+00> : vector<16x32xf32>
    %2 = tpu.matmul %0, %1, %cst {dimension_numbers = #tpu.dot_dimension_numbers<[1], [0], [0], [1], [0, 0, 1, 1], [], []>} : vector<16x50xf32>, vector<50x32xf32>, vector<16x32xf32> -> vector<16x32xf32>
    %c0_3 = arith.constant 0 : index
    %c0_4 = arith.constant 0 : index
    %3 = vector.load %arg1[%c0_3, %c0_4] : memref<16x32xf32, #tpu.memory_space<vmem>>, vector<16x32xf32>
    %4 = arith.addf %2, %3 : vector<16x32xf32>
    %c0_5 = arith.constant 0 : index
    %c0_6 = arith.constant 0 : index
    %5 = vector.load %arg2[%c0_5, %c0_6] : memref<16x64xf32, #tpu.memory_space<vmem>>, vector<16x64xf32>
    %c0_7 = arith.constant 0 : index
    %c0_8 = arith.constant 0 : index
    %6 = vector.load %arg3[%c0_7, %c0_8] : memref<64x32xf32, #tpu.memory_space<vmem>>, vector<64x32xf32>
    %c0_9 = arith.constant 0 : index
    %c0_10 = arith.constant 0 : index
    %c0_11 = arith.constant 0 : index
    %7 = vector.load %arg5[%c0_9, %c0_10, %c0_11] : memref<2x96x32xf32, #tpu.memory_space<vmem>>, vector<1x96x32xf32>
    %8 = vector.shape_cast %7 : vector<1x96x32xf32> to vector<96x32xf32>
    %c0_12 = arith.constant 0 : index
    %c0_13 = arith.constant 0 : index
    %c0_14 = arith.constant 0 : index
    %9 = vector.load %arg6[%c0_12, %c0_13, %c0_14] : memref<2x32x32xf32, #tpu.memory_space<vmem>>, vector<1x32x32xf32>
    %10 = vector.shape_cast %9 : vector<1x32x32xf32> to vector<32x32xf32>
    %c0_15 = arith.constant 0 : index
    %c0_16 = arith.constant 0 : index
    %c0_17 = arith.constant 0 : index
    %11 = vector.load %arg7[%c0_15, %c0_16, %c0_17] : memref<2x64x32xf32, #tpu.memory_space<vmem>>, vector<1x64x32xf32>
    %12 = vector.shape_cast %11 : vector<1x64x32xf32> to vector<64x32xf32>
    %c0_18 = arith.constant 0 : index
    %c0_19 = arith.constant 0 : index
    %c0_20 = arith.constant 0 : index
    %13 = vector.load %arg8[%c0_18, %c0_19, %c0_20] : memref<2x32x64xf32, #tpu.memory_space<vmem>>, vector<1x32x64xf32>
    %14 = vector.shape_cast %13 : vector<1x32x64xf32> to vector<32x64xf32>
    %c0_21 = arith.constant 0 : index
    %c0_22 = arith.constant 0 : index
    %c0_23 = arith.constant 0 : index
    %15 = vector.load %arg9[%c0_21, %c0_22, %c0_23] : memref<2x8x96xf32, #tpu.memory_space<vmem>>, vector<1x8x96xf32>
    %16 = vector.shape_cast %15 : vector<1x8x96xf32> to vector<8x96xf32>
    %cst_24 = arith.constant dense<0.000000e+00> : vector<16x96xf32>
    %17 = tpu.matmul %4, %8, %cst_24 {dimension_numbers = #tpu.dot_dimension_numbers<[1], [1], [0], [0], [0, 0, 1, 0], [], []>} : vector<16x32xf32>, vector<96x32xf32>, vector<16x96xf32> -> vector<16x96xf32>
    %18 = vector.extract_strided_slice %16 {offsets = [0, 0], sizes = [1, 96], strides = [1, 1]} : vector<8x96xf32> to vector<1x96xf32>
    %19 = vector.broadcast %18 : vector<1x96xf32> to vector<16x96xf32>
    %20 = arith.addf %17, %19 : vector<16x96xf32>
    %21 = vector.extract_strided_slice %20 {offsets = [0, 0], sizes = [16, 32], strides = [1, 1]} : vector<16x96xf32> to vector<16x32xf32>
    %22 = vector.extract_strided_slice %20 {offsets = [0, 32], sizes = [16, 32], strides = [1, 1]} : vector<16x96xf32> to vector<16x32xf32>
    %23 = vector.extract_strided_slice %20 {offsets = [0, 64], sizes = [16, 32], strides = [1, 1]} : vector<16x96xf32> to vector<16x32xf32>
    %24 = vector.shape_cast %22 : vector<16x32xf32> to vector<1x16x32xf32>
    %25 = vector.shape_cast %24 : vector<1x16x32xf32> to vector<1x16x32xf32>
    %26 = vector.broadcast %25 : vector<1x16x32xf32> to vector<4x16x32xf32>
    %27 = vector.shape_cast %26 : vector<4x16x32xf32> to vector<64x32xf32>
    %28 = arith.mulf %27, %6 : vector<64x32xf32>
    %29 = vector.shape_cast %23 : vector<16x32xf32> to vector<1x16x32xf32>
    %30 = vector.shape_cast %29 : vector<1x16x32xf32> to vector<1x16x32xf32>
    %31 = vector.broadcast %30 : vector<1x16x32xf32> to vector<4x16x32xf32>
    %32 = vector.shape_cast %31 : vector<4x16x32xf32> to vector<64x32xf32>
    %33 = arith.mulf %32, %6 : vector<64x32xf32>
    %cst_25 = arith.constant dense<0.000000e+00> : vector<16x64xf32>
    %34 = tpu.matmul %21, %28, %cst_25 {dimension_numbers = #tpu.dot_dimension_numbers<[1], [1], [0], [0], [0, 0, 1, 0], [], []>} : vector<16x32xf32>, vector<64x32xf32>, vector<16x64xf32> -> vector<16x64xf32>
    %35 = arith.addf %34, %5 : vector<16x64xf32>
    %cst_26 = arith.constant dense<0xFF800000> : vector<16xf32>
    %36 = vector.multi_reduction <maximumf>, %35, %cst_26 [1] : vector<16x64xf32> to vector<16xf32>
    %37 = vector.shape_cast %36 : vector<16xf32> to vector<16x1xf32>
    %38 = vector.broadcast %37 : vector<16x1xf32> to vector<16x64xf32>
    %39 = arith.subf %35, %38 : vector<16x64xf32>
    %40 = math.exp %39 : vector<16x64xf32>
    %cst_27 = arith.constant dense<0.000000e+00> : vector<16x32xf32>
    %41 = tpu.matmul %40, %6, %cst_27 {dimension_numbers = #tpu.dot_dimension_numbers<[1], [0], [0], [1], [0, 0, 1, 1], [], []>} : vector<16x64xf32>, vector<64x32xf32>, vector<16x32xf32> -> vector<16x32xf32>
    %cst_28 = arith.constant dense<0.000000e+00> : vector<16x32xf32>
    %42 = tpu.matmul %40, %33, %cst_28 {dimension_numbers = #tpu.dot_dimension_numbers<[1], [0], [0], [1], [0, 0, 1, 1], [], []>} : vector<16x64xf32>, vector<64x32xf32>, vector<16x32xf32> -> vector<16x32xf32>
    %43 = tpu.reciprocal %41 : vector<16x32xf32> -> vector<16x32xf32>
    %44 = arith.mulf %42, %43 : vector<16x32xf32>
    %cst_29 = arith.constant dense<0.000000e+00> : vector<16x32xf32>
    %45 = tpu.matmul %44, %10, %cst_29 {dimension_numbers = #tpu.dot_dimension_numbers<[1], [1], [0], [0], [0, 0, 1, 0], [], []>} : vector<16x32xf32>, vector<32x32xf32>, vector<16x32xf32> -> vector<16x32xf32>
    %46 = vector.extract_strided_slice %16 {offsets = [1, 0], sizes = [1, 32], strides = [1, 1]} : vector<8x96xf32> to vector<1x32xf32>
    %47 = vector.broadcast %46 : vector<1x32xf32> to vector<16x32xf32>
    %48 = arith.addf %45, %47 : vector<16x32xf32>
    %49 = arith.addf %4, %48 : vector<16x32xf32>
    %50 = vector.extract_strided_slice %16 {offsets = [2, 0], sizes = [1, 32], strides = [1, 1]} : vector<8x96xf32> to vector<1x32xf32>
    %51 = vector.extract_strided_slice %16 {offsets = [3, 0], sizes = [1, 32], strides = [1, 1]} : vector<8x96xf32> to vector<1x32xf32>
    %cst_30 = arith.constant dense<0.000000e+00> : vector<16xf32>
    %52 = vector.multi_reduction <add>, %49, %cst_30 [1] : vector<16x32xf32> to vector<16xf32>
    %53 = vector.shape_cast %52 : vector<16xf32> to vector<16x1xf32>
    %cst_31 = arith.constant 3.200000e+01 : f32
    %54 = vector.broadcast %cst_31 : f32 to vector<16x1xf32>
    %55 = arith.divf %53, %54 : vector<16x1xf32>
    %56 = vector.broadcast %55 : vector<16x1xf32> to vector<16x32xf32>
    %57 = arith.subf %49, %56 : vector<16x32xf32>
    %58 = arith.mulf %57, %57 : vector<16x32xf32>
    %cst_32 = arith.constant dense<0.000000e+00> : vector<16xf32>
    %59 = vector.multi_reduction <add>, %58, %cst_32 [1] : vector<16x32xf32> to vector<16xf32>
    %60 = vector.shape_cast %59 : vector<16xf32> to vector<16x1xf32>
    %cst_33 = arith.constant 3.200000e+01 : f32
    %61 = vector.broadcast %cst_33 : f32 to vector<16x1xf32>
    %62 = arith.divf %60, %61 : vector<16x1xf32>
    %63 = vector.broadcast %55 : vector<16x1xf32> to vector<16x32xf32>
    %64 = arith.subf %49, %63 : vector<16x32xf32>
    %cst_34 = arith.constant 9.99999974E-6 : f32
    %65 = vector.broadcast %cst_34 : f32 to vector<16x1xf32>
    %66 = arith.addf %62, %65 : vector<16x1xf32>
    %67 = math.rsqrt %66 : vector<16x1xf32>
    %68 = vector.broadcast %67 : vector<16x1xf32> to vector<16x32xf32>
    %69 = arith.mulf %64, %68 : vector<16x32xf32>
    %70 = vector.broadcast %50 : vector<1x32xf32> to vector<16x32xf32>
    %71 = arith.mulf %69, %70 : vector<16x32xf32>
    %72 = vector.broadcast %51 : vector<1x32xf32> to vector<16x32xf32>
    %73 = arith.addf %71, %72 : vector<16x32xf32>
    %cst_35 = arith.constant dense<0.000000e+00> : vector<16x64xf32>
    %74 = tpu.matmul %73, %12, %cst_35 {dimension_numbers = #tpu.dot_dimension_numbers<[1], [1], [0], [0], [0, 0, 1, 0], [], []>} : vector<16x32xf32>, vector<64x32xf32>, vector<16x64xf32> -> vector<16x64xf32>
    %75 = vector.extract_strided_slice %16 {offsets = [4, 0], sizes = [1, 64], strides = [1, 1]} : vector<8x96xf32> to vector<1x64xf32>
    %76 = vector.broadcast %75 : vector<1x64xf32> to vector<16x64xf32>
    %77 = arith.addf %74, %76 : vector<16x64xf32>
    %cst_36 = arith.constant 0.000000e+00 : f32
    %78 = vector.broadcast %cst_36 : f32 to vector<16x64xf32>
    %79 = arith.maximumf %77, %78 : vector<16x64xf32>
    %cst_37 = arith.constant dense<0.000000e+00> : vector<16x32xf32>
    %80 = tpu.matmul %79, %14, %cst_37 {dimension_numbers = #tpu.dot_dimension_numbers<[1], [1], [0], [0], [0, 0, 1, 0], [], []>} : vector<16x64xf32>, vector<32x64xf32>, vector<16x32xf32> -> vector<16x32xf32>
    %81 = vector.extract_strided_slice %16 {offsets = [5, 0], sizes = [1, 32], strides = [1, 1]} : vector<8x96xf32> to vector<1x32xf32>
    %82 = vector.broadcast %81 : vector<1x32xf32> to vector<16x32xf32>
    %83 = arith.addf %80, %82 : vector<16x32xf32>
    %84 = arith.addf %73, %83 : vector<16x32xf32>
    %85 = vector.extract_strided_slice %16 {offsets = [6, 0], sizes = [1, 32], strides = [1, 1]} : vector<8x96xf32> to vector<1x32xf32>
    %86 = vector.extract_strided_slice %16 {offsets = [7, 0], sizes = [1, 32], strides = [1, 1]} : vector<8x96xf32> to vector<1x32xf32>
    %cst_38 = arith.constant dense<0.000000e+00> : vector<16xf32>
    %87 = vector.multi_reduction <add>, %84, %cst_38 [1] : vector<16x32xf32> to vector<16xf32>
    %88 = vector.shape_cast %87 : vector<16xf32> to vector<16x1xf32>
    %cst_39 = arith.constant 3.200000e+01 : f32
    %89 = vector.broadcast %cst_39 : f32 to vector<16x1xf32>
    %90 = arith.divf %88, %89 : vector<16x1xf32>
    %91 = vector.broadcast %90 : vector<16x1xf32> to vector<16x32xf32>
    %92 = arith.subf %84, %91 : vector<16x32xf32>
    %93 = arith.mulf %92, %92 : vector<16x32xf32>
    %cst_40 = arith.constant dense<0.000000e+00> : vector<16xf32>
    %94 = vector.multi_reduction <add>, %93, %cst_40 [1] : vector<16x32xf32> to vector<16xf32>
    %95 = vector.shape_cast %94 : vector<16xf32> to vector<16x1xf32>
    %cst_41 = arith.constant 3.200000e+01 : f32
    %96 = vector.broadcast %cst_41 : f32 to vector<16x1xf32>
    %97 = arith.divf %95, %96 : vector<16x1xf32>
    %98 = vector.broadcast %90 : vector<16x1xf32> to vector<16x32xf32>
    %99 = arith.subf %84, %98 : vector<16x32xf32>
    %cst_42 = arith.constant 9.99999974E-6 : f32
    %100 = vector.broadcast %cst_42 : f32 to vector<16x1xf32>
    %101 = arith.addf %97, %100 : vector<16x1xf32>
    %102 = math.rsqrt %101 : vector<16x1xf32>
    %103 = vector.broadcast %102 : vector<16x1xf32> to vector<16x32xf32>
    %104 = arith.mulf %99, %103 : vector<16x32xf32>
    %105 = vector.broadcast %85 : vector<1x32xf32> to vector<16x32xf32>
    %106 = arith.mulf %104, %105 : vector<16x32xf32>
    %107 = vector.broadcast %86 : vector<1x32xf32> to vector<16x32xf32>
    %108 = arith.addf %106, %107 : vector<16x32xf32>
    %c1 = arith.constant 1 : index
    %c0_43 = arith.constant 0 : index
    %c0_44 = arith.constant 0 : index
    %109 = vector.load %arg5[%c1, %c0_43, %c0_44] : memref<2x96x32xf32, #tpu.memory_space<vmem>>, vector<1x96x32xf32>
    %110 = vector.shape_cast %109 : vector<1x96x32xf32> to vector<96x32xf32>
    %c1_45 = arith.constant 1 : index
    %c0_46 = arith.constant 0 : index
    %c0_47 = arith.constant 0 : index
    %111 = vector.load %arg6[%c1_45, %c0_46, %c0_47] : memref<2x32x32xf32, #tpu.memory_space<vmem>>, vector<1x32x32xf32>
    %112 = vector.shape_cast %111 : vector<1x32x32xf32> to vector<32x32xf32>
    %c1_48 = arith.constant 1 : index
    %c0_49 = arith.constant 0 : index
    %c0_50 = arith.constant 0 : index
    %113 = vector.load %arg7[%c1_48, %c0_49, %c0_50] : memref<2x64x32xf32, #tpu.memory_space<vmem>>, vector<1x64x32xf32>
    %114 = vector.shape_cast %113 : vector<1x64x32xf32> to vector<64x32xf32>
    %c1_51 = arith.constant 1 : index
    %c0_52 = arith.constant 0 : index
    %c0_53 = arith.constant 0 : index
    %115 = vector.load %arg8[%c1_51, %c0_52, %c0_53] : memref<2x32x64xf32, #tpu.memory_space<vmem>>, vector<1x32x64xf32>
    %116 = vector.shape_cast %115 : vector<1x32x64xf32> to vector<32x64xf32>
    %c1_54 = arith.constant 1 : index
    %c0_55 = arith.constant 0 : index
    %c0_56 = arith.constant 0 : index
    %117 = vector.load %arg9[%c1_54, %c0_55, %c0_56] : memref<2x8x96xf32, #tpu.memory_space<vmem>>, vector<1x8x96xf32>
    %118 = vector.shape_cast %117 : vector<1x8x96xf32> to vector<8x96xf32>
    %cst_57 = arith.constant dense<0.000000e+00> : vector<16x96xf32>
    %119 = tpu.matmul %108, %110, %cst_57 {dimension_numbers = #tpu.dot_dimension_numbers<[1], [1], [0], [0], [0, 0, 1, 0], [], []>} : vector<16x32xf32>, vector<96x32xf32>, vector<16x96xf32> -> vector<16x96xf32>
    %120 = vector.extract_strided_slice %118 {offsets = [0, 0], sizes = [1, 96], strides = [1, 1]} : vector<8x96xf32> to vector<1x96xf32>
    %121 = vector.broadcast %120 : vector<1x96xf32> to vector<16x96xf32>
    %122 = arith.addf %119, %121 : vector<16x96xf32>
    %123 = vector.extract_strided_slice %122 {offsets = [0, 0], sizes = [16, 32], strides = [1, 1]} : vector<16x96xf32> to vector<16x32xf32>
    %124 = vector.extract_strided_slice %122 {offsets = [0, 32], sizes = [16, 32], strides = [1, 1]} : vector<16x96xf32> to vector<16x32xf32>
    %125 = vector.extract_strided_slice %122 {offsets = [0, 64], sizes = [16, 32], strides = [1, 1]} : vector<16x96xf32> to vector<16x32xf32>
    %126 = vector.shape_cast %124 : vector<16x32xf32> to vector<1x16x32xf32>
    %127 = vector.shape_cast %126 : vector<1x16x32xf32> to vector<1x16x32xf32>
    %128 = vector.broadcast %127 : vector<1x16x32xf32> to vector<4x16x32xf32>
    %129 = vector.shape_cast %128 : vector<4x16x32xf32> to vector<64x32xf32>
    %130 = arith.mulf %129, %6 : vector<64x32xf32>
    %131 = vector.shape_cast %125 : vector<16x32xf32> to vector<1x16x32xf32>
    %132 = vector.shape_cast %131 : vector<1x16x32xf32> to vector<1x16x32xf32>
    %133 = vector.broadcast %132 : vector<1x16x32xf32> to vector<4x16x32xf32>
    %134 = vector.shape_cast %133 : vector<4x16x32xf32> to vector<64x32xf32>
    %135 = arith.mulf %134, %6 : vector<64x32xf32>
    %cst_58 = arith.constant dense<0.000000e+00> : vector<16x64xf32>
    %136 = tpu.matmul %123, %130, %cst_58 {dimension_numbers = #tpu.dot_dimension_numbers<[1], [1], [0], [0], [0, 0, 1, 0], [], []>} : vector<16x32xf32>, vector<64x32xf32>, vector<16x64xf32> -> vector<16x64xf32>
    %137 = arith.addf %136, %5 : vector<16x64xf32>
    %cst_59 = arith.constant dense<0xFF800000> : vector<16xf32>
    %138 = vector.multi_reduction <maximumf>, %137, %cst_59 [1] : vector<16x64xf32> to vector<16xf32>
    %139 = vector.shape_cast %138 : vector<16xf32> to vector<16x1xf32>
    %140 = vector.broadcast %139 : vector<16x1xf32> to vector<16x64xf32>
    %141 = arith.subf %137, %140 : vector<16x64xf32>
    %142 = math.exp %141 : vector<16x64xf32>
    %cst_60 = arith.constant dense<0.000000e+00> : vector<16x32xf32>
    %143 = tpu.matmul %142, %6, %cst_60 {dimension_numbers = #tpu.dot_dimension_numbers<[1], [0], [0], [1], [0, 0, 1, 1], [], []>} : vector<16x64xf32>, vector<64x32xf32>, vector<16x32xf32> -> vector<16x32xf32>
    %cst_61 = arith.constant dense<0.000000e+00> : vector<16x32xf32>
    %144 = tpu.matmul %142, %135, %cst_61 {dimension_numbers = #tpu.dot_dimension_numbers<[1], [0], [0], [1], [0, 0, 1, 1], [], []>} : vector<16x64xf32>, vector<64x32xf32>, vector<16x32xf32> -> vector<16x32xf32>
    %145 = tpu.reciprocal %143 : vector<16x32xf32> -> vector<16x32xf32>
    %146 = arith.mulf %144, %145 : vector<16x32xf32>
    %cst_62 = arith.constant dense<0.000000e+00> : vector<16x32xf32>
    %147 = tpu.matmul %146, %112, %cst_62 {dimension_numbers = #tpu.dot_dimension_numbers<[1], [1], [0], [0], [0, 0, 1, 0], [], []>} : vector<16x32xf32>, vector<32x32xf32>, vector<16x32xf32> -> vector<16x32xf32>
    %148 = vector.extract_strided_slice %118 {offsets = [1, 0], sizes = [1, 32], strides = [1, 1]} : vector<8x96xf32> to vector<1x32xf32>
    %149 = vector.broadcast %148 : vector<1x32xf32> to vector<16x32xf32>
    %150 = arith.addf %147, %149 : vector<16x32xf32>
    %151 = arith.addf %108, %150 : vector<16x32xf32>
    %152 = vector.extract_strided_slice %118 {offsets = [2, 0], sizes = [1, 32], strides = [1, 1]} : vector<8x96xf32> to vector<1x32xf32>
    %153 = vector.extract_strided_slice %118 {offsets = [3, 0], sizes = [1, 32], strides = [1, 1]} : vector<8x96xf32> to vector<1x32xf32>
    %cst_63 = arith.constant dense<0.000000e+00> : vector<16xf32>
    %154 = vector.multi_reduction <add>, %151, %cst_63 [1] : vector<16x32xf32> to vector<16xf32>
    %155 = vector.shape_cast %154 : vector<16xf32> to vector<16x1xf32>
    %cst_64 = arith.constant 3.200000e+01 : f32
    %156 = vector.broadcast %cst_64 : f32 to vector<16x1xf32>
    %157 = arith.divf %155, %156 : vector<16x1xf32>
    %158 = vector.broadcast %157 : vector<16x1xf32> to vector<16x32xf32>
    %159 = arith.subf %151, %158 : vector<16x32xf32>
    %160 = arith.mulf %159, %159 : vector<16x32xf32>
    %cst_65 = arith.constant dense<0.000000e+00> : vector<16xf32>
    %161 = vector.multi_reduction <add>, %160, %cst_65 [1] : vector<16x32xf32> to vector<16xf32>
    %162 = vector.shape_cast %161 : vector<16xf32> to vector<16x1xf32>
    %cst_66 = arith.constant 3.200000e+01 : f32
    %163 = vector.broadcast %cst_66 : f32 to vector<16x1xf32>
    %164 = arith.divf %162, %163 : vector<16x1xf32>
    %165 = vector.broadcast %157 : vector<16x1xf32> to vector<16x32xf32>
    %166 = arith.subf %151, %165 : vector<16x32xf32>
    %cst_67 = arith.constant 9.99999974E-6 : f32
    %167 = vector.broadcast %cst_67 : f32 to vector<16x1xf32>
    %168 = arith.addf %164, %167 : vector<16x1xf32>
    %169 = math.rsqrt %168 : vector<16x1xf32>
    %170 = vector.broadcast %169 : vector<16x1xf32> to vector<16x32xf32>
    %171 = arith.mulf %166, %170 : vector<16x32xf32>
    %172 = vector.broadcast %152 : vector<1x32xf32> to vector<16x32xf32>
    %173 = arith.mulf %171, %172 : vector<16x32xf32>
    %174 = vector.broadcast %153 : vector<1x32xf32> to vector<16x32xf32>
    %175 = arith.addf %173, %174 : vector<16x32xf32>
    %cst_68 = arith.constant dense<0.000000e+00> : vector<16x64xf32>
    %176 = tpu.matmul %175, %114, %cst_68 {dimension_numbers = #tpu.dot_dimension_numbers<[1], [1], [0], [0], [0, 0, 1, 0], [], []>} : vector<16x32xf32>, vector<64x32xf32>, vector<16x64xf32> -> vector<16x64xf32>
    %177 = vector.extract_strided_slice %118 {offsets = [4, 0], sizes = [1, 64], strides = [1, 1]} : vector<8x96xf32> to vector<1x64xf32>
    %178 = vector.broadcast %177 : vector<1x64xf32> to vector<16x64xf32>
    %179 = arith.addf %176, %178 : vector<16x64xf32>
    %cst_69 = arith.constant 0.000000e+00 : f32
    %180 = vector.broadcast %cst_69 : f32 to vector<16x64xf32>
    %181 = arith.maximumf %179, %180 : vector<16x64xf32>
    %cst_70 = arith.constant dense<0.000000e+00> : vector<16x32xf32>
    %182 = tpu.matmul %181, %116, %cst_70 {dimension_numbers = #tpu.dot_dimension_numbers<[1], [1], [0], [0], [0, 0, 1, 0], [], []>} : vector<16x64xf32>, vector<32x64xf32>, vector<16x32xf32> -> vector<16x32xf32>
    %183 = vector.extract_strided_slice %118 {offsets = [5, 0], sizes = [1, 32], strides = [1, 1]} : vector<8x96xf32> to vector<1x32xf32>
    %184 = vector.broadcast %183 : vector<1x32xf32> to vector<16x32xf32>
    %185 = arith.addf %182, %184 : vector<16x32xf32>
    %186 = arith.addf %175, %185 : vector<16x32xf32>
    %187 = vector.extract_strided_slice %118 {offsets = [6, 0], sizes = [1, 32], strides = [1, 1]} : vector<8x96xf32> to vector<1x32xf32>
    %188 = vector.extract_strided_slice %118 {offsets = [7, 0], sizes = [1, 32], strides = [1, 1]} : vector<8x96xf32> to vector<1x32xf32>
    %cst_71 = arith.constant dense<0.000000e+00> : vector<16xf32>
    %189 = vector.multi_reduction <add>, %186, %cst_71 [1] : vector<16x32xf32> to vector<16xf32>
    %190 = vector.shape_cast %189 : vector<16xf32> to vector<16x1xf32>
    %cst_72 = arith.constant 3.200000e+01 : f32
    %191 = vector.broadcast %cst_72 : f32 to vector<16x1xf32>
    %192 = arith.divf %190, %191 : vector<16x1xf32>
    %193 = vector.broadcast %192 : vector<16x1xf32> to vector<16x32xf32>
    %194 = arith.subf %186, %193 : vector<16x32xf32>
    %195 = arith.mulf %194, %194 : vector<16x32xf32>
    %cst_73 = arith.constant dense<0.000000e+00> : vector<16xf32>
    %196 = vector.multi_reduction <add>, %195, %cst_73 [1] : vector<16x32xf32> to vector<16xf32>
    %197 = vector.shape_cast %196 : vector<16xf32> to vector<16x1xf32>
    %cst_74 = arith.constant 3.200000e+01 : f32
    %198 = vector.broadcast %cst_74 : f32 to vector<16x1xf32>
    %199 = arith.divf %197, %198 : vector<16x1xf32>
    %200 = vector.broadcast %192 : vector<16x1xf32> to vector<16x32xf32>
    %201 = arith.subf %186, %200 : vector<16x32xf32>
    %cst_75 = arith.constant 9.99999974E-6 : f32
    %202 = vector.broadcast %cst_75 : f32 to vector<16x1xf32>
    %203 = arith.addf %199, %202 : vector<16x1xf32>
    %204 = math.rsqrt %203 : vector<16x1xf32>
    %205 = vector.broadcast %204 : vector<16x1xf32> to vector<16x32xf32>
    %206 = arith.mulf %201, %205 : vector<16x32xf32>
    %207 = vector.broadcast %187 : vector<1x32xf32> to vector<16x32xf32>
    %208 = arith.mulf %206, %207 : vector<16x32xf32>
    %209 = vector.broadcast %188 : vector<1x32xf32> to vector<16x32xf32>
    %210 = arith.addf %208, %209 : vector<16x32xf32>
    %211 = vector.shape_cast %210 : vector<16x32xf32> to vector<2x8x32xf32>
    %cst_76 = arith.constant dense<0xFF800000> : vector<2x32xf32>
    %212 = vector.multi_reduction <maximumf>, %211, %cst_76 [1] : vector<2x8x32xf32> to vector<2x32xf32>
    %cst_77 = arith.constant dense<0x7F800000> : vector<2x32xf32>
    %213 = vector.multi_reduction <minimumf>, %211, %cst_77 [1] : vector<2x8x32xf32> to vector<2x32xf32>
    %cst_78 = arith.constant dense<0.000000e+00> : vector<2x32xf32>
    %214 = vector.multi_reduction <add>, %211, %cst_78 [1] : vector<2x8x32xf32> to vector<2x32xf32>
    %cst_79 = arith.constant 8.000000e+00 : f32
    %215 = vector.broadcast %cst_79 : f32 to vector<2x32xf32>
    %216 = arith.divf %214, %215 : vector<2x32xf32>
    %c0_80 = arith.constant 0 : index
    %c0_81 = arith.constant 0 : index
    %c0_82 = arith.constant 0 : index
    %217 = vector.load %arg10[%c0_80, %c0_81, %c0_82] : memref<3x32x32xf32, #tpu.memory_space<vmem>>, vector<1x32x32xf32>
    %218 = vector.shape_cast %217 : vector<1x32x32xf32> to vector<32x32xf32>
    %cst_83 = arith.constant dense<0.000000e+00> : vector<2x32xf32>
    %219 = tpu.matmul %212, %218, %cst_83 {dimension_numbers = #tpu.dot_dimension_numbers<[1], [1], [0], [0], [0, 0, 1, 0], [], []>} : vector<2x32xf32>, vector<32x32xf32>, vector<2x32xf32> -> vector<2x32xf32>
    %c1_84 = arith.constant 1 : index
    %c0_85 = arith.constant 0 : index
    %c0_86 = arith.constant 0 : index
    %220 = vector.load %arg10[%c1_84, %c0_85, %c0_86] : memref<3x32x32xf32, #tpu.memory_space<vmem>>, vector<1x32x32xf32>
    %221 = vector.shape_cast %220 : vector<1x32x32xf32> to vector<32x32xf32>
    %cst_87 = arith.constant dense<0.000000e+00> : vector<2x32xf32>
    %222 = tpu.matmul %213, %221, %cst_87 {dimension_numbers = #tpu.dot_dimension_numbers<[1], [1], [0], [0], [0, 0, 1, 0], [], []>} : vector<2x32xf32>, vector<32x32xf32>, vector<2x32xf32> -> vector<2x32xf32>
    %223 = arith.addf %219, %222 : vector<2x32xf32>
    %c2 = arith.constant 2 : index
    %c0_88 = arith.constant 0 : index
    %c0_89 = arith.constant 0 : index
    %224 = vector.load %arg10[%c2, %c0_88, %c0_89] : memref<3x32x32xf32, #tpu.memory_space<vmem>>, vector<1x32x32xf32>
    %225 = vector.shape_cast %224 : vector<1x32x32xf32> to vector<32x32xf32>
    %cst_90 = arith.constant dense<0.000000e+00> : vector<2x32xf32>
    %226 = tpu.matmul %216, %225, %cst_90 {dimension_numbers = #tpu.dot_dimension_numbers<[1], [1], [0], [0], [0, 0, 1, 0], [], []>} : vector<2x32xf32>, vector<32x32xf32>, vector<2x32xf32> -> vector<2x32xf32>
    %227 = arith.addf %223, %226 : vector<2x32xf32>
    %c0_91 = arith.constant 0 : index
    %c0_92 = arith.constant 0 : index
    %228 = vector.load %arg11[%c0_91, %c0_92] : memref<1x32xf32, #tpu.memory_space<vmem>>, vector<1x32xf32>
    %229 = vector.broadcast %228 : vector<1x32xf32> to vector<2x32xf32>
    %230 = arith.addf %227, %229 : vector<2x32xf32>
    %cst_93 = arith.constant 0.000000e+00 : f32
    %231 = vector.broadcast %cst_93 : f32 to vector<2x32xf32>
    %232 = arith.maximumf %230, %231 : vector<2x32xf32>
    %c0_94 = arith.constant 0 : index
    %c0_95 = arith.constant 0 : index
    %233 = vector.load %arg12[%c0_94, %c0_95] : memref<3x32xf32, #tpu.memory_space<vmem>>, vector<3x32xf32>
    %cst_96 = arith.constant dense<0.000000e+00> : vector<2x3xf32>
    %234 = tpu.matmul %232, %233, %cst_96 {dimension_numbers = #tpu.dot_dimension_numbers<[1], [1], [0], [0], [0, 0, 1, 0], [], []>} : vector<2x32xf32>, vector<3x32xf32>, vector<2x3xf32> -> vector<2x3xf32>
    %c0_97 = arith.constant 0 : index
    %c0_98 = arith.constant 0 : index
    %235 = vector.load %arg13[%c0_97, %c0_98] : memref<1x3xf32, #tpu.memory_space<vmem>>, vector<1x3xf32>
    %236 = vector.broadcast %235 : vector<1x3xf32> to vector<2x3xf32>
    %237 = arith.addf %234, %236 : vector<2x3xf32>
    %c0_99 = arith.constant 0 : index
    %c0_100 = arith.constant 0 : index
    %238 = vector.load %arg14[%c0_99, %c0_100] : memref<2x3xf32, #tpu.memory_space<vmem>>, vector<2x3xf32>
    tpu.vector_store %arg14[%c0_99, %c0_100], %237 {strides = array<i32>} : memref<2x3xf32, #tpu.memory_space<vmem>>, vector<2x3xf32>,
    return
  }
}

</mosaic_0001>

<llo_original>
// kernel: eq.15
$region0: #{eq.15}
  %s0 = inlined_call_operand.vmem [shape: s32[2,8], index: 0, kind: input, shape index: {}]
  %s1 = inlined_call_operand.vmem [shape: s32[16], index: 1, kind: output, shape index: {}]
  $region1: #{eq.15} parent=0
    #allocation0 [shape = 'u8[4096]{0}', space=vmem, size = 0x1000, scoped, tag = 'scoped mem for output reshape']
    #allocation1 [shape = 'u8[4096]{0}', space=vmem, size = 0x1000, scoped, tag = 'scoped mem for input reshape']
    %s3 = sshllo.u32 0, 2
    %v4 = vld [vmem:[%s0] sm:%s3]
    %5 = vst [vmem:[#allocation1] sm:%s3] %v4
    %v6 = vld [vmem:[#allocation1] sm:$0x1]
    %vm7 = vcmask 64512
    %8 = vst.msk [vmem:[#allocation0] sm:$0x1] %vm7, %v6
    %s9 = scalar_lea.vmem [#allocation1], 1
    %v10 = vld [vmem:[%s9] sm:$0x1]
    %11 = vrot.lane.b32.xlu0 %v10, 8
    %v12 = vpop.permute.xlu0 %11
    %vm13 = vcmask 130112
    %14 = vst.msk [vmem:[#allocation0] sm:$0x1] %vm13, %v12
    %s16 = sshllo.u32 0, 1
    %v18 = vld [vmem:[#allocation0] sm:%s16]
    %s19 = sshllo.u32 0, 1
    %20 = vst [vmem:[%s1] sm:%s19] %v18

// kernel: tile.19
$region0: #{tile.19}
  %s0 = inlined_call_operand.vmem [shape: f32[16,4,16], index: 0, kind: input, shape index: {}]
  %s1 = inlined_call_operand.vmem [shape: f32[16,64], index: 1, kind: output, shape index: {}]
  $region1: #{tile.19} parent=0
    #allocation0 [shape = 'u8[65536]{0}', space=vmem, size = 0x10000, scoped, tag = 'scoped mem for input reshape']
    %s3 = sshllo.u32 0, 4
    %s4 = smul.addr 4, 15
    %s5 = scalar_lea.vmem %s0, %s4
    %v6 = vld [vmem:[%s5] sm:%s3]
    %s7 = scalar_lea.vmem [#allocation0], 120
    %8 = vst [vmem:[%s7] sm:%s3] %v6
    %s9 = smul.addr 4, 14
    %s10 = scalar_lea.vmem %s0, %s9
    %v11 = vld [vmem:[%s10] sm:%s3]
    %s12 = scalar_lea.vmem [#allocation0], 112
    %13 = vst [vmem:[%s12] sm:%s3] %v11
    %s14 = smul.addr 4, 13
    %s15 = scalar_lea.vmem %s0, %s14
    %v16 = vld [vmem:[%s15] sm:%s3]
    %s17 = scalar_lea.vmem [#allocation0], 104
    %18 = vst [vmem:[%s17] sm:%s3] %v16
    %s19 = smul.addr 4, 12
    %s20 = scalar_lea.vmem %s0, %s19
    %v21 = vld [vmem:[%s20] sm:%s3]
    %s22 = scalar_lea.vmem [#allocation0], 96
    %23 = vst [vmem:[%s22] sm:%s3] %v21
    %s24 = smul.addr 4, 11
    %s25 = scalar_lea.vmem %s0, %s24
    %v26 = vld [vmem:[%s25] sm:%s3]
    %s27 = scalar_lea.vmem [#allocation0], 88
    %28 = vst [vmem:[%s27] sm:%s3] %v26
    %s29 = smul.addr 4, 10
    %s30 = scalar_lea.vmem %s0, %s29
    %v31 = vld [vmem:[%s30] sm:%s3]
    %s32 = scalar_lea.vmem [#allocation0], 80
    %33 = vst [vmem:[%s32] sm:%s3] %v31
    %s34 = smul.addr 4, 9
    %s35 = scalar_lea.vmem %s0, %s34
    %v36 = vld [vmem:[%s35] sm:%s3]
    %s37 = scalar_lea.vmem [#allocation0], 72
    %38 = vst [vmem:[%s37] sm:%s3] %v36
    %s39 = smul.addr 4, 8
    %s40 = scalar_lea.vmem %s0, %s39
    %v41 = vld [vmem:[%s40] sm:%s3]
    %s42 = scalar_lea.vmem [#allocation0], 64
    %43 = vst [vmem:[%s42] sm:%s3] %v41
    %s44 = smul.addr 4, 7
    %s45 = scalar_lea.vmem %s0, %s44
    %v46 = vld [vmem:[%s45] sm:%s3]
    %s47 = scalar_lea.vmem [#allocation0], 56
    %48 = vst [vmem:[%s47] sm:%s3] %v46
    %s49 = smul.addr 4, 6
    %s50 = scalar_lea.vmem %s0, %s49
    %v51 = vld [vmem:[%s50] sm:%s3]
    %s52 = scalar_lea.vmem [#allocation0], 48
    %53 = vst [vmem:[%s52] sm:%s3] %v51
    %s54 = smul.addr 4, 5
    %s55 = scalar_lea.vmem %s0, %s54
    %v56 = vld [vmem:[%s55] sm:%s3]
    %s57 = scalar_lea.vmem [#allocation0], 40
    %58 = vst [vmem:[%s57] sm:%s3] %v56
    %s59 = smul.addr 4, 4
    %s60 = scalar_lea.vmem %s0, %s59
    %v61 = vld [vmem:[%s60] sm:%s3]
    %s62 = scalar_lea.vmem [#allocation0], 32
    %63 = vst [vmem:[%s62] sm:%s3] %v61
    %s64 = smul.addr 4, 3
    %s65 = scalar_lea.vmem %s0, %s64
    %v66 = vld [vmem:[%s65] sm:%s3]
    %s67 = scalar_lea.vmem [#allocation0], 24
    %68 = vst [vmem:[%s67] sm:%s3] %v66
    %s69 = smul.addr 4, 2
    %s70 = scalar_lea.vmem %s0, %s69
    %v71 = vld [vmem:[%s70] sm:%s3]
    %s72 = scalar_lea.vmem [#allocation0], 16
    %73 = vst [vmem:[%s72] sm:%s3] %v71
    %s74 = scalar_lea.vmem %s0, 4
    %v75 = vld [vmem:[%s74] sm:%s3]
    %s76 = scalar_lea.vmem [#allocation0], 8
    %77 = vst [vmem:[%s76] sm:%s3] %v75
    %v78 = vld [vmem:[%s0] sm:%s3]
    %79 = vst [vmem:[#allocation0] sm:%s3] %v78
    %v80 = vld [vmem:[#allocation0] ss:$8 sm:$0xf]
    %v81 = vld [vmem:[#allocation0] ss:$8 sm:$0xf0]
    %vm82 = vcmask 1047556
    %v83 = vsel %vm82, %v81, %v80
    %vm84 = vcmask 130048
    %85 = vst.msk [vmem:[%s1] sm:$0xff] %vm84, %v83
    %s86 = scalar_lea.vmem [#allocation0], 64
    %v87 = vld [vmem:[%s86] ss:$8 sm:$0xf]
    %s88 = scalar_lea.vmem [#allocation0], 64
    %v89 = vld [vmem:[%s88] ss:$8 sm:$0xf0]
    %vm90 = vcmask 1047556
    %v91 = vsel %vm90, %v89, %v87
    %vm92 = vcmask 130048
    %s93 = scalar_lea.vmem %s1, 8
    %94 = vst.msk [vmem:[%s93] sm:$0xff] %vm92, %v91
    %s95 = scalar_lea.vmem [#allocation0], 3
    %v96 = vld [vmem:[%s95] ss:$8 sm:$0xf]
    %s97 = scalar_lea.vmem [#allocation0], 3
    %v98 = vld [vmem:[%s97] ss:$8 sm:$0xf0]
    %vm99 = vcmask 1047556
    %v100 = vsel %vm99, %v98, %v96
    %101 = vrot.lane.b32.xlu0 %v100, 48
    %v102 = vpop.permute.xlu0 %101
    %vm103 = vcmask 523648
    %104 = vst.msk [vmem:[%s1] sm:$0xff] %vm103, %v102
    %s105 = scalar_lea.vmem [#allocation0], 67
    %v106 = vld [vmem:[%s105] ss:$8 sm:$0xf]
    %s107 = scalar_lea.vmem [#allocation0], 67
    %v108 = vld [vmem:[%s107] ss:$8 sm:$0xf0]
    %vm109 = vcmask 1047556
    %v110 = vsel %vm109, %v108, %v106
    %111 = vrot.lane.b32.xlu0 %v110, 48
    %v112 = vpop.permute.xlu0 %111
    %vm113 = vcmask 523648
    %s114 = scalar_lea.vmem %s1, 8
    %115 = vst.msk [vmem:[%s114] sm:$0xff] %vm113, %v112
    %s116 = scalar_lea.vmem [#allocation0], 2
    %v117 = vld [vmem:[%s116] ss:$8 sm:$0xf]
    %s118 = scalar_lea.vmem [#allocation0], 2
    %v119 = vld [vmem:[%s118] ss:$8 sm:$0xf0]
    %vm120 = vcmask 1047556
    %v121 = vsel %vm120, %v119, %v117
    %122 = vrot.lane.b32.xlu0 %v121, 32
    %v123 = vpop.permute.xlu0 %122
    %vm124 = vcmask 392448
    %125 = vst.msk [vmem:[%s1] sm:$0xff] %vm124, %v123
    %s126 = scalar_lea.vmem [#allocation0], 66
    %v127 = vld [vmem:[%s126] ss:$8 sm:$0xf]
    %s128 = scalar_lea.vmem [#allocation0], 66
    %v129 = vld [vmem:[%s128] ss:$8 sm:$0xf0]
    %vm130 = vcmask 1047556
    %v131 = vsel %vm130, %v129, %v127
    %132 = vrot.lane.b32.xlu0 %v131, 32
    %v133 = vpop.permute.xlu0 %132
    %vm134 = vcmask 392448
    %s135 = scalar_lea.vmem %s1, 8
    %136 = vst.msk [vmem:[%s135] sm:$0xff] %vm134, %v133
    %s137 = scalar_lea.vmem [#allocation0], 1
    %v138 = vld [vmem:[%s137] ss:$8 sm:$0xf]
    %s139 = scalar_lea.vmem [#allocation0], 1
    %v140 = vld [vmem:[%s139] ss:$8 sm:$0xf0]
    %vm141 = vcmask 1047556
    %v142 = vsel %vm141, %v140, %v138
    %143 = vrot.lane.b32.xlu0 %v142, 16
    %v144 = vpop.permute.xlu0 %143
    %vm145 = vcmask 261248
    %146 = vst.msk [vmem:[%s1] sm:$0xff] %vm145, %v144
    %s147 = scalar_lea.vmem [#allocation0], 65
    %v148 = vld [vmem:[%s147] ss:$8 sm:$0xf]
    %s149 = scalar_lea.vmem [#allocation0], 65
    %v150 = vld [vmem:[%s149] ss:$8 sm:$0xf0]
    %vm151 = vcmask 1047556
    %v152 = vsel %vm151, %v150, %v148
    %153 = vrot.lane.b32.xlu0 %v152, 16
    %v154 = vpop.permute.xlu0 %153
    %vm155 = vcmask 261248
    %s156 = scalar_lea.vmem %s1, 8
    %157 = vst.msk [vmem:[%s156] sm:$0xff] %vm155, %v154

// kernel: forward.1
$region0: #{forward.1}
  #allocation0 [shape = 'u32[]', space=smem, size = 0x4, offset = 0x4, fixed_abs, tag = 'smem constant byte address 0x4 - core index']
  #allocation1 [shape = 'u32[144,128]{1,0:T(1,128)}', space=vmem, size = 0x12000, scoped, tag = 'internal scratch']
  %s0 = inlined_call_operand.vmem [shape: f32[16,50], index: 0, kind: input, shape index: {}]
  %s1 = inlined_call_operand.vmem [shape: f32[16,32], index: 1, kind: input, shape index: {}]
  %s2 = inlined_call_operand.vmem [shape: f32[16,64], index: 2, kind: input, shape index: {}]
  %s3 = inlined_call_operand.vmem [shape: f32[64,32], index: 3, kind: input, shape index: {}]
  %s4 = inlined_call_operand.vmem [shape: f32[50,32], index: 4, kind: input, shape index: {}]
  %s5 = inlined_call_operand.vmem [shape: f32[2,96,32], index: 5, kind: input, shape index: {}]
  %s6 = inlined_call_operand.vmem [shape: f32[2,32,32], index: 6, kind: input, shape index: {}]
  %s7 = inlined_call_operand.vmem [shape: f32[2,64,32], index: 7, kind: input, shape index: {}]
  %s8 = inlined_call_operand.vmem [shape: f32[2,32,64], index: 8, kind: input, shape index: {}]
  %s9 = inlined_call_operand.vmem [shape: f32[2,8,96], index: 9, kind: input, shape index: {}]
  %s10 = inlined_call_operand.vmem [shape: f32[3,32,32], index: 10, kind: input, shape index: {}]
  %s11 = inlined_call_operand.vmem [shape: f32[1,32], index: 11, kind: input, shape index: {}]
  %s12 = inlined_call_operand.vmem [shape: f32[3,32], index: 12, kind: input, shape index: {}]
  %s13 = inlined_call_operand.vmem [shape: f32[1,3], index: 13, kind: input, shape index: {}]
  %s14 = inlined_call_operand.hbm [shape: f32[2,3], index: 14, kind: output, shape index: {}]
  %s15 = sld [smem:[#allocation0]]
  $region66: #{forward.1} parent=0
    _
  %s17 = ssub.s32 1, %s15
  %s18 = scalar_select 0, %s17, %s15
  $region1: #{forward.1} parent=0
    #allocation2 [shape = 'u8[1024]{0}', space=vmem, size = 0x400, scoped, tag = 'output window, operand 0, single buffered']
    #allocation3 [shape = 's32[1]{0}', space=sflag, size = 0x4, scoped, tag = 'scoped memory for forward.1']
    %19 = vsyncpa [#allocation3], 0
    // Predicated region
    $region2: #{forward.1} parent=1 // pred_check
      _
    $region3: #{forward.1} parent=1 // pred_check_branch
      %21 = sbr.rel (0) target = $region5
    $region4: #{forward.1} parent=1 // pred_region
      _
    $region5: #{forward.1} parent=1 // pred_fallthru
      _
    // Predicated region
    $region6: #{forward.1} parent=1 // pred_check
      _
    $region7: #{forward.1} parent=1 // pred_check_branch
      %23 = sbr.rel (0) target = $region9
    $region8: #{forward.1} parent=1 // pred_region
      _
    $region9: #{forward.1} parent=1 // pred_fallthru
      _
    // Predicated region
    $region10: #{forward.1} parent=1 // pred_check
      _
    $region11: #{forward.1} parent=1 // pred_check_branch
      %25 = sbr.rel (0) target = $region13
    $region12: #{forward.1} parent=1 // pred_region
      _
    $region13: #{forward.1} parent=1 // pred_fallthru
      _
    // Predicated region
    $region14: #{forward.1} parent=1 // pred_check
      _
    $region15: #{forward.1} parent=1 // pred_check_branch
      %27 = sbr.rel (0) target = $region17
    $region16: #{forward.1} parent=1 // pred_region
      _
    $region17: #{forward.1} parent=1 // pred_fallthru
      _
    // Predicated region
    $region18: #{forward.1} parent=1 // pred_check
      _
    $region19: #{forward.1} parent=1 // pred_check_branch
      %29 = sbr.rel (0) target = $region21
    $region20: #{forward.1} parent=1 // pred_region
      _
    $region21: #{forward.1} parent=1 // pred_fallthru
      _
    // Predicated region
    $region22: #{forward.1} parent=1 // pred_check
      _
    $region23: #{forward.1} parent=1 // pred_check_branch
      %31 = sbr.rel (0) target = $region25
    $region24: #{forward.1} parent=1 // pred_region
      _
    $region25: #{forward.1} parent=1 // pred_fallthru
      _
    // Predicated region
    $region26: #{forward.1} parent=1 // pred_check
      _
    $region27: #{forward.1} parent=1 // pred_check_branch
      %33 = sbr.rel (0) target = $region29
    $region28: #{forward.1} parent=1 // pred_region
      _
    $region29: #{forward.1} parent=1 // pred_fallthru
      _
    // Predicated region
    $region30: #{forward.1} parent=1 // pred_check
      _
    $region31: #{forward.1} parent=1 // pred_check_branch
      %35 = sbr.rel (0) target = $region33
    $region32: #{forward.1} parent=1 // pred_region
      _
    $region33: #{forward.1} parent=1 // pred_fallthru
      _
    // Predicated region
    $region34: #{forward.1} parent=1 // pred_check
      _
    $region35: #{forward.1} parent=1 // pred_check_branch
      %37 = sbr.rel (0) target = $region37
    $region36: #{forward.1} parent=1 // pred_region
      _
    $region37: #{forward.1} parent=1 // pred_fallthru
      _
    // Predicated region
    $region38: #{forward.1} parent=1 // pred_check
      _
    $region39: #{forward.1} parent=1 // pred_check_branch
      %39 = sbr.rel (0) target = $region41
    $region40: #{forward.1} parent=1 // pred_region
      _
    $region41: #{forward.1} parent=1 // pred_fallthru
      _
    // Predicated region
    $region42: #{forward.1} parent=1 // pred_check
      _
    $region43: #{forward.1} parent=1 // pred_check_branch
      %41 = sbr.rel (0) target = $region45
    $region44: #{forward.1} parent=1 // pred_region
      _
    $region45: #{forward.1} parent=1 // pred_fallthru
      _
    // Predicated region
    $region46: #{forward.1} parent=1 // pred_check
      _
    $region47: #{forward.1} parent=1 // pred_check_branch
      %43 = sbr.rel (0) target = $region49
    $region48: #{forward.1} parent=1 // pred_region
      _
    $region49: #{forward.1} parent=1 // pred_fallthru
      _
    // Predicated region
    $region50: #{forward.1} parent=1 // pred_check
      _
    $region51: #{forward.1} parent=1 // pred_check_branch
      %45 = sbr.rel (0) target = $region53
    $region52: #{forward.1} parent=1 // pred_region
      _
    $region53: #{forward.1} parent=1 // pred_fallthru
      _
    // Predicated region
    $region54: #{forward.1} parent=1 // pred_check
      _
    $region55: #{forward.1} parent=1 // pred_check_branch
      %47 = sbr.rel (0) target = $region57
    $region56: #{forward.1} parent=1 // pred_region
      _
    $region57: #{forward.1} parent=1 // pred_fallthru
      _
    %v48 = vld [vmem:[%s0] sm:$0xff]
    %v49 = vld [vmem:[%s0 + $0x8] sm:$0xff]
    %v50 = vld [vmem:[%s4] sm:$0xff]
    %v51 = vld [vmem:[%s4 + $0x8] sm:$0xff]
    %v52 = vld [vmem:[%s4 + $0x10] sm:$0xff]
    %v53 = vld [vmem:[%s4 + $0x18] sm:$0xff]
    %v54 = vld [vmem:[%s4 + $0x20] sm:$0xff]
    %v55 = vld [vmem:[%s4 + $0x28] sm:$0xff]
    %v56 = vld [vmem:[%s4 + $0x30] sm:$0x3]
    %v57 = vld [vmem:[%s1] sm:$0xff]
    %v58 = vld [vmem:[%s1 + $0x8] sm:$0xff]
    %vm59 = vcmask 408576
    %v61 = vsel %vm59, %v48, 0
    %v64 = vsel %vm59, %v49, 0
    %vm66 = vcmask 1041408
    %v68 = vsel %vm66, %v56, 0
    %70 = vmatprep.subr.mxu0 0.0
    %71 = vmatpush1.msra.mxu0 %v50
    %72 = vmatprep.subr.mxu0 0.0
    %73 = vmatpush1.msra.mxu0 %v51
    %74 = vmatprep.subr.mxu0 0.0
    %75 = vmatpush1.msra.mxu0 %v52
    %76 = vmatprep.subr.mxu0 0.0
    %77 = vmatpush1.msra.mxu0 %v53
    %78 = vmatprep.subr.mxu0 0.0
    %79 = vmatpush1.msra.mxu0 %v54
    %80 = vmatprep.subr.mxu0 0.0
    %81 = vmatpush1.msra.mxu0 %v55
    %82 = vmatprep.subr.mxu0 0.0
    %83 = vmatpush1.msra.mxu0 %v68
    %84 = vmatprep.subr.mxu0 0.0
    %85 = vmatpush1.msra.mxu0 0.0
    %86 = vmatprep.subr.mxu0 0.0
    %87 = vmatpush1.msra.mxu0 0.0
    %88 = vmatprep.subr.mxu0 0.0
    %89 = vmatpush1.msra.mxu0 0.0
    %90 = vmatprep.subr.mxu0 0.0
    %91 = vmatpush1.msra.mxu0 0.0
    %92 = vmatprep.subr.mxu0 0.0
    %93 = vmatpush1.msra.mxu0 0.0
    %94 = vmatprep.subr.mxu0 0.0
    %95 = vmatpush1.msra.mxu0 0.0
    %96 = vmatprep.subr.mxu0 0.0
    %97 = vmatpush1.msra.mxu0 0.0
    %98 = vmatprep.subr.mxu0 0.0
    %99 = vmatpush1.msra.mxu0 0.0
    %100 = vmatprep.subr.mxu0 0.0
    %101 = vmatpush1.msra.mxu0 0.0
    %102 = vmatprep.subr.mxu0 0.0
    %103 = vmatpush1.msra.mxu0 0.0
    %104 = vmatprep.subr.mxu0 0.0
    %105 = vmatpush1.msra.mxu0 0.0
    %106 = vmatprep.subr.mxu0 0.0
    %107 = vmatpush1.msra.mxu0 0.0
    %108 = vmatprep.subr.mxu0 0.0
    %109 = vmatpush1.msra.mxu0 0.0
    %110 = vmatprep.subr.mxu0 0.0
    %111 = vmatpush1.msra.mxu0 0.0
    %112 = vmatprep.subr.mxu0 0.0
    %113 = vmatpush1.msra.mxu0 0.0
    %114 = vmatprep.subr.mxu0 0.0
    %115 = vmatpush1.msra.mxu0 0.0
    %116 = vmatprep.subr.mxu0 0.0
    %117 = vmatpush1.msra.mxu0 0.0
    %118 = vmatprep.subr.mxu0 0.0
    %119 = vmatpush1.msra.mxu0 0.0
    %120 = vmatprep.subr.mxu0 0.0
    %121 = vmatpush1.msra.mxu0 0.0
    %122 = vmatprep.subr.mxu0 0.0
    %123 = vmatpush1.msra.mxu0 0.0
    %124 = vmatprep.subr.mxu0 0.0
    %125 = vmatpush1.msra.mxu0 0.0
    %126 = vmatprep.subr.mxu0 0.0
    %127 = vmatpush1.msra.mxu0 0.0
    %128 = vmatprep.subr.mxu0 0.0
    %129 = vmatpush1.msra.mxu0 0.0
    %130 = vmatprep.subr.mxu0 0.0
    %131 = vmatpush1.msra.mxu0 0.0
    %132 = vmatprep.subr.mxu0 0.0
    %133 = vmatpush1.msra.mxu0 0.0
    %134 = vmatprep.mubr.f32.mxu0 0.0
    %135 = vmatmul.mubr.f32.gmra.mrb[0].mxu0 %v61
    %v136 = vpop.f32.mrb[0].mxu0
    %v137 = vadd.f32 %v57, %v136
    %v138 = vpop.f32.mrb[0].mxu0
    %139 = vmatprep.mubr.f32.mxu0 0.0
    %140 = vmatmul.mubr.f32.gmra.mrb[0].mxu0 %v64
    %v141 = vpop.f32.mrb[0].mxu0
    %v142 = vadd.f32 %v58, %v141
    %v143 = vpop.f32.mrb[0].mxu0
    %144 = vdwg.mxu0
    %v145 = vld [vmem:[%s2] sm:$0xff]
    %v146 = vld [vmem:[%s2 + $0x8] sm:$0xff]
    %v147 = vld [vmem:[%s3] sm:$0xff]
    %v148 = vld [vmem:[%s3 + $0x8] sm:$0xff]
    %v149 = vld [vmem:[%s3 + $0x10] sm:$0xff]
    %v150 = vld [vmem:[%s3 + $0x18] sm:$0xff]
    %v151 = vld [vmem:[%s3 + $0x20] sm:$0xff]
    %v152 = vld [vmem:[%s3 + $0x28] sm:$0xff]
    %v153 = vld [vmem:[%s3 + $0x30] sm:$0xff]
    %v154 = vld [vmem:[%s3 + $0x38] sm:$0xff]
    %v155 = vld [vmem:[%s5] sm:$0xff]
    %v156 = vld [vmem:[%s5 + $0x8] sm:$0xff]
    %v157 = vld [vmem:[%s5 + $0x10] sm:$0xff]
    %v158 = vld [vmem:[%s5 + $0x18] sm:$0xff]
    %v159 = vld [vmem:[%s5 + $0x20] sm:$0xff]
    %v160 = vld [vmem:[%s5 + $0x28] sm:$0xff]
    %v161 = vld [vmem:[%s5 + $0x30] sm:$0xff]
    %v162 = vld [vmem:[%s5 + $0x38] sm:$0xff]
    %v163 = vld [vmem:[%s5 + $0x40] sm:$0xff]
    %v164 = vld [vmem:[%s5 + $0x48] sm:$0xff]
    %v165 = vld [vmem:[%s5 + $0x50] sm:$0xff]
    %v166 = vld [vmem:[%s5 + $0x58] sm:$0xff]
    %v167 = vld [vmem:[%s6] sm:$0xff]
    %v168 = vld [vmem:[%s6 + $0x8] sm:$0xff]
    %v169 = vld [vmem:[%s6 + $0x10] sm:$0xff]
    %v170 = vld [vmem:[%s6 + $0x18] sm:$0xff]
    %v171 = vld [vmem:[%s7] sm:$0xff]
    %v172 = vld [vmem:[%s7 + $0x8] sm:$0xff]
    %v173 = vld [vmem:[%s7 + $0x10] sm:$0xff]
    %v174 = vld [vmem:[%s7 + $0x18] sm:$0xff]
    %v175 = vld [vmem:[%s7 + $0x20] sm:$0xff]
    %v176 = vld [vmem:[%s7 + $0x28] sm:$0xff]
    %v177 = vld [vmem:[%s7 + $0x30] sm:$0xff]
    %v178 = vld [vmem:[%s7 + $0x38] sm:$0xff]
    %v179 = vld [vmem:[%s8] sm:$0xff]
    %v180 = vld [vmem:[%s8 + $0x8] sm:$0xff]
    %v181 = vld [vmem:[%s8 + $0x10] sm:$0xff]
    %v182 = vld [vmem:[%s8 + $0x18] sm:$0xff]
    %v183 = vld [vmem:[%s9] sm:$0xff]
    %v184 = vlaneseq
    %v185 = vshrl.u32 %v184, 7
    %v186 = vsub.s32 0, %v185
    %v187 = vrot.slane %v183, %v186
    %vm188 = vcmask 261120
    %v190 = vsel %vm188, %v137, 0
    %v193 = vsel %vm188, %v142, 0
    %v196 = vsel %vm188, %v155, 0
    %v199 = vsel %vm188, %v156, 0
    %v202 = vsel %vm188, %v157, 0
    %v205 = vsel %vm188, %v158, 0
    %v208 = vsel %vm188, %v159, 0
    %v211 = vsel %vm188, %v160, 0
    %v214 = vsel %vm188, %v161, 0
    %v217 = vsel %vm188, %v162, 0
    %v220 = vsel %vm188, %v163, 0
    %v223 = vsel %vm188, %v164, 0
    %v226 = vsel %vm188, %v165, 0
    %v229 = vsel %vm188, %v166, 0
    %231 = vmatprep.subr.mxu0 0.0
    %232 = vmatpush1.xpose.msra.mxu0 %v196
    %233 = vmatprep.subr.mxu0 0.0
    %234 = vmatpush1.xpose.msra.mxu0 %v199
    %235 = vmatprep.subr.mxu0 0.0
    %236 = vmatpush1.xpose.msra.mxu0 %v202
    %237 = vmatprep.subr.mxu0 0.0
    %238 = vmatpush1.xpose.msra.mxu0 %v205
    %239 = vmatprep.subr.mxu0 0.0
    %240 = vmatpush1.xpose.msra.mxu0 %v208
    %241 = vmatprep.subr.mxu0 0.0
    %242 = vmatpush1.xpose.msra.mxu0 %v211
    %243 = vmatprep.subr.mxu0 0.0
    %244 = vmatpush1.xpose.msra.mxu0 %v214
    %245 = vmatprep.subr.mxu0 0.0
    %246 = vmatpush1.xpose.msra.mxu0 %v217
    %247 = vmatprep.subr.mxu0 0.0
    %248 = vmatpush1.xpose.msra.mxu0 %v220
    %249 = vmatprep.subr.mxu0 0.0
    %250 = vmatpush1.xpose.msra.mxu0 %v223
    %251 = vmatprep.subr.mxu0 0.0
    %252 = vmatpush1.xpose.msra.mxu0 %v226
    %253 = vmatprep.subr.mxu0 0.0
    %254 = vmatpush1.xpose.msra.mxu0 %v229
    %255 = vmatprep.subr.mxu0 0.0
    %256 = vmatpush1.xpose.msra.mxu0 0.0
    %257 = vmatprep.subr.mxu0 0.0
    %258 = vmatpush1.xpose.msra.mxu0 0.0
    %259 = vmatprep.subr.mxu0 0.0
    %260 = vmatpush1.xpose.msra.mxu0 0.0
    %261 = vmatprep.subr.mxu0 0.0
    %262 = vmatpush1.xpose.msra.mxu0 0.0
    %263 = vmatprep.subr.mxu0 0.0
    %264 = vmatpush1.xpose.msra.mxu0 0.0
    %265 = vmatprep.subr.mxu0 0.0
    %266 = vmatpush1.xpose.msra.mxu0 0.0
    %267 = vmatprep.subr.mxu0 0.0
    %268 = vmatpush1.xpose.msra.mxu0 0.0
    %269 = vmatprep.subr.mxu0 0.0
    %270 = vmatpush1.xpose.msra.mxu0 0.0
    %271 = vmatprep.subr.mxu0 0.0
    %272 = vmatpush1.xpose.msra.mxu0 0.0
    %273 = vmatprep.subr.mxu0 0.0
    %274 = vmatpush1.xpose.msra.mxu0 0.0
    %275 = vmatprep.subr.mxu0 0.0
    %276 = vmatpush1.xpose.msra.mxu0 0.0
    %277 = vmatprep.subr.mxu0 0.0
    %278 = vmatpush1.xpose.msra.mxu0 0.0
    %279 = vmatprep.subr.mxu0 0.0
    %280 = vmatpush1.xpose.msra.mxu0 0.0
    %281 = vmatprep.subr.mxu0 0.0
    %282 = vmatpush1.xpose.msra.mxu0 0.0
    %283 = vmatprep.subr.mxu0 0.0
    %284 = vmatpush1.xpose.msra.mxu0 0.0
    %285 = vmatprep.subr.mxu0 0.0
    %286 = vmatpush1.xpose.msra.mxu0 0.0
    %287 = vmatprep.subr.mxu0 0.0
    %288 = vmatpush1.xpose.msra.mxu0 0.0
    %289 = vmatprep.subr.mxu0 0.0
    %290 = vmatpush1.xpose.msra.mxu0 0.0
    %291 = vmatprep.subr.mxu0 0.0
    %292 = vmatpush1.xpose.msra.mxu0 0.0
    %293 = vmatprep.subr.mxu0 0.0
    %294 = vmatpush1.xpose.msra.mxu0 0.0
    %295 = vmatprep.mubr.f32.mxu0 0.0
    %296 = vmatmul.mubr.f32.gmra.mrb[0].mxu0 %v190
    %v297 = vpop.f32.mrb[0].mxu0
    %v298 = vadd.f32 %v187, %v297
    %v299 = vpop.f32.mrb[0].mxu0
    %300 = vmatprep.mubr.f32.mxu0 0.0
    %301 = vmatmul.mubr.f32.gmra.mrb[0].mxu0 %v193
    %v302 = vpop.f32.mrb[0].mxu0
    %v303 = vadd.f32 %v187, %v302
    %v304 = vpop.f32.mrb[0].mxu0
    %305 = vdwg.mxu0
    %314 = vrot.lane.b32.xlu0 %v147, 32
    %v315 = vpop.permute.xlu0 %314
    %316 = vrot.lane.b32.xlu0 %v148, 32
    %v317 = vpop.permute.xlu0 %316
    %318 = vrot.lane.b32.xlu0 %v149, 32
    %v319 = vpop.permute.xlu0 %318
    %320 = vrot.lane.b32.xlu0 %v150, 32
    %v321 = vpop.permute.xlu0 %320
    %322 = vrot.lane.b32.xlu0 %v151, 32
    %v323 = vpop.permute.xlu0 %322
    %324 = vrot.lane.b32.xlu0 %v152, 32
    %v325 = vpop.permute.xlu0 %324
    %326 = vrot.lane.b32.xlu0 %v153, 32
    %v327 = vpop.permute.xlu0 %326
    %328 = vrot.lane.b32.xlu0 %v154, 32
    %v329 = vpop.permute.xlu0 %328
    %v338 = vmul.f32 %v298, %v315
    %v339 = vmul.f32 %v303, %v317
    %v340 = vmul.f32 %v298, %v319
    %v341 = vmul.f32 %v303, %v321
    %v342 = vmul.f32 %v298, %v323
    %v343 = vmul.f32 %v303, %v325
    %v344 = vmul.f32 %v298, %v327
    %v345 = vmul.f32 %v303, %v329
    %346 = vrot.lane.b32.xlu0 %v147, 64
    %v347 = vpop.permute.xlu0 %346
    %348 = vrot.lane.b32.xlu0 %v148, 64
    %v349 = vpop.permute.xlu0 %348
    %350 = vrot.lane.b32.xlu0 %v149, 64
    %v351 = vpop.permute.xlu0 %350
    %352 = vrot.lane.b32.xlu0 %v150, 64
    %v353 = vpop.permute.xlu0 %352
    %354 = vrot.lane.b32.xlu0 %v151, 64
    %v355 = vpop.permute.xlu0 %354
    %356 = vrot.lane.b32.xlu0 %v152, 64
    %v357 = vpop.permute.xlu0 %356
    %358 = vrot.lane.b32.xlu0 %v153, 64
    %v359 = vpop.permute.xlu0 %358
    %360 = vrot.lane.b32.xlu0 %v154, 64
    %v361 = vpop.permute.xlu0 %360
    %v370 = vmul.f32 %v298, %v347
    %v371 = vmul.f32 %v303, %v349
    %v372 = vmul.f32 %v298, %v351
    %v373 = vmul.f32 %v303, %v353
    %v374 = vmul.f32 %v298, %v355
    %v375 = vmul.f32 %v303, %v357
    %v376 = vmul.f32 %v298, %v359
    %v377 = vmul.f32 %v303, %v361
    %386 = vrot.lane.b32.xlu0 %v338, 96
    %v387 = vpop.permute.xlu0 %386
    %388 = vrot.lane.b32.xlu0 %v339, 96
    %v389 = vpop.permute.xlu0 %388
    %390 = vrot.lane.b32.xlu0 %v340, 96
    %v391 = vpop.permute.xlu0 %390
    %392 = vrot.lane.b32.xlu0 %v341, 96
    %v393 = vpop.permute.xlu0 %392
    %394 = vrot.lane.b32.xlu0 %v342, 96
    %v395 = vpop.permute.xlu0 %394
    %396 = vrot.lane.b32.xlu0 %v343, 96
    %v397 = vpop.permute.xlu0 %396
    %398 = vrot.lane.b32.xlu0 %v344, 96
    %v399 = vpop.permute.xlu0 %398
    %400 = vrot.lane.b32.xlu0 %v345, 96
    %v401 = vpop.permute.xlu0 %400
    %v403 = vsel %vm188, %v298, 0
    %v406 = vsel %vm188, %v303, 0
    %v408 = vsel %vm188, %v387, 0
    %v410 = vsel %vm188, %v389, 0
    %v412 = vsel %vm188, %v391, 0
    %v414 = vsel %vm188, %v393, 0
    %v416 = vsel %vm188, %v395, 0
    %v418 = vsel %vm188, %v397, 0
    %v420 = vsel %vm188, %v399, 0
    %v422 = vsel %vm188, %v401, 0
    %424 = vmatprep.subr.mxu0 0.0
    %425 = vmatpush1.xpose.msra.mxu0 %v408
    %426 = vmatprep.subr.mxu0 0.0
    %427 = vmatpush1.xpose.msra.mxu0 %v410
    %428 = vmatprep.subr.mxu0 0.0
    %429 = vmatpush1.xpose.msra.mxu0 %v412
    %430 = vmatprep.subr.mxu0 0.0
    %431 = vmatpush1.xpose.msra.mxu0 %v414
    %432 = vmatprep.subr.mxu0 0.0
    %433 = vmatpush1.xpose.msra.mxu0 %v416
    %434 = vmatprep.subr.mxu0 0.0
    %435 = vmatpush1.xpose.msra.mxu0 %v418
    %436 = vmatprep.subr.mxu0 0.0
    %437 = vmatpush1.xpose.msra.mxu0 %v420
    %438 = vmatprep.subr.mxu0 0.0
    %439 = vmatpush1.xpose.msra.mxu0 %v422
    %440 = vmatprep.subr.mxu0 0.0
    %441 = vmatpush1.xpose.msra.mxu0 0.0
    %442 = vmatprep.subr.mxu0 0.0
    %443 = vmatpush1.xpose.msra.mxu0 0.0
    %444 = vmatprep.subr.mxu0 0.0
    %445 = vmatpush1.xpose.msra.mxu0 0.0
    %446 = vmatprep.subr.mxu0 0.0
    %447 = vmatpush1.xpose.msra.mxu0 0.0
    %448 = vmatprep.subr.mxu0 0.0
    %449 = vmatpush1.xpose.msra.mxu0 0.0
    %450 = vmatprep.subr.mxu0 0.0
    %451 = vmatpush1.xpose.msra.mxu0 0.0
    %452 = vmatprep.subr.mxu0 0.0
    %453 = vmatpush1.xpose.msra.mxu0 0.0
    %454 = vmatprep.subr.mxu0 0.0
    %455 = vmatpush1.xpose.msra.mxu0 0.0
    %456 = vmatprep.subr.mxu0 0.0
    %457 = vmatpush1.xpose.msra.mxu0 0.0
    %458 = vmatprep.subr.mxu0 0.0
    %459 = vmatpush1.xpose.msra.mxu0 0.0
    %460 = vmatprep.subr.mxu0 0.0
    %461 = vmatpush1.xpose.msra.mxu0 0.0
    %462 = vmatprep.subr.mxu0 0.0
    %463 = vmatpush1.xpose.msra.mxu0 0.0
    %464 = vmatprep.subr.mxu0 0.0
    %465 = vmatpush1.xpose.msra.mxu0 0.0
    %466 = vmatprep.subr.mxu0 0.0
    %467 = vmatpush1.xpose.msra.mxu0 0.0
    %468 = vmatprep.subr.mxu0 0.0
    %469 = vmatpush1.xpose.msra.mxu0 0.0
    %470 = vmatprep.subr.mxu0 0.0
    %471 = vmatpush1.xpose.msra.mxu0 0.0
    %472 = vmatprep.subr.mxu0 0.0
    %473 = vmatpush1.xpose.msra.mxu0 0.0
    %474 = vmatprep.subr.mxu0 0.0
    %475 = vmatpush1.xpose.msra.mxu0 0.0
    %476 = vmatprep.subr.mxu0 0.0
    %477 = vmatpush1.xpose.msra.mxu0 0.0
    %478 = vmatprep.subr.mxu0 0.0
    %479 = vmatpush1.xpose.msra.mxu0 0.0
    %480 = vmatprep.subr.mxu0 0.0
    %481 = vmatpush1.xpose.msra.mxu0 0.0
    %482 = vmatprep.subr.mxu0 0.0
    %483 = vmatpush1.xpose.msra.mxu0 0.0
    %484 = vmatprep.subr.mxu0 0.0
    %485 = vmatpush1.xpose.msra.mxu0 0.0
    %486 = vmatprep.subr.mxu0 0.0
    %487 = vmatpush1.xpose.msra.mxu0 0.0
    %488 = vmatprep.mubr.f32.mxu0 0.0
    %489 = vmatmul.mubr.f32.gmra.mrb[0].mxu0 %v403
    %v490 = vpop.f32.mrb[0].mxu0
    %v491 = vadd.f32 %v145, %v490
    %v492 = vpop.f32.mrb[0].mxu0
    %493 = vmatprep.mubr.f32.mxu0 0.0
    %494 = vmatmul.mubr.f32.gmra.mrb[0].mxu0 %v406
    %v495 = vpop.f32.mrb[0].mxu0
    %v496 = vadd.f32 %v146, %v495
    %v497 = vpop.f32.mrb[0].mxu0
    %498 = vdwg.mxu0
    %vm499 = vcmask 523264
    %v500 = vsel %vm499, %v491, -inf
    %501 = vmax.xlane.f32.xlu0 %v500
    %v502 = vpop.xlane.xlu0 %501
    %v503 = vsel %vm499, %v496, -inf
    %504 = vmax.xlane.f32.xlu0 %v503
    %v505 = vpop.xlane.xlu0 %504
    %v506 = vsub.f32 %v491, %v502
    %v507 = vsub.f32 %v496, %v505
    %v508 = vmul.f32 %v506, 1.442695
    %v509 = vpow.pop %v508
    %v510 = vmul.f32 %v507, 1.442695
    %v511 = vpow.pop %v510
    %v513 = vsel %vm499, %v509, 0
    %v516 = vsel %vm499, %v511, 0
    %518 = vmatprep.subr.mxu0 0.0
    %519 = vmatpush1.msra.mxu0 %v147
    %520 = vmatprep.subr.mxu0 0.0
    %521 = vmatpush1.msra.mxu0 %v148
    %522 = vmatprep.subr.mxu0 0.0
    %523 = vmatpush1.msra.mxu0 %v149
    %524 = vmatprep.subr.mxu0 0.0
    %525 = vmatpush1.msra.mxu0 %v150
    %526 = vmatprep.subr.mxu0 0.0
    %527 = vmatpush1.msra.mxu0 %v151
    %528 = vmatprep.subr.mxu0 0.0
    %529 = vmatpush1.msra.mxu0 %v152
    %530 = vmatprep.subr.mxu0 0.0
    %531 = vmatpush1.msra.mxu0 %v153
    %532 = vmatprep.subr.mxu0 0.0
    %533 = vmatpush1.msra.mxu0 %v154
    %534 = vmatprep.subr.mxu0 0.0
    %535 = vmatpush1.msra.mxu0 0.0
    %536 = vmatprep.subr.mxu0 0.0
    %537 = vmatpush1.msra.mxu0 0.0
    %538 = vmatprep.subr.mxu0 0.0
    %539 = vmatpush1.msra.mxu0 0.0
    %540 = vmatprep.subr.mxu0 0.0
    %541 = vmatpush1.msra.mxu0 0.0
    %542 = vmatprep.subr.mxu0 0.0
    %543 = vmatpush1.msra.mxu0 0.0
    %544 = vmatprep.subr.mxu0 0.0
    %545 = vmatpush1.msra.mxu0 0.0
    %546 = vmatprep.subr.mxu0 0.0
    %547 = vmatpush1.msra.mxu0 0.0
    %548 = vmatprep.subr.mxu0 0.0
    %549 = vmatpush1.msra.mxu0 0.0
    %550 = vmatprep.subr.mxu0 0.0
    %551 = vmatpush1.msra.mxu0 0.0
    %552 = vmatprep.subr.mxu0 0.0
    %553 = vmatpush1.msra.mxu0 0.0
    %554 = vmatprep.subr.mxu0 0.0
    %555 = vmatpush1.msra.mxu0 0.0
    %556 = vmatprep.subr.mxu0 0.0
    %557 = vmatpush1.msra.mxu0 0.0
    %558 = vmatprep.subr.mxu0 0.0
    %559 = vmatpush1.msra.mxu0 0.0
    %560 = vmatprep.subr.mxu0 0.0
    %561 = vmatpush1.msra.mxu0 0.0
    %562 = vmatprep.subr.mxu0 0.0
    %563 = vmatpush1.msra.mxu0 0.0
    %564 = vmatprep.subr.mxu0 0.0
    %565 = vmatpush1.msra.mxu0 0.0
    %566 = vmatprep.subr.mxu0 0.0
    %567 = vmatpush1.msra.mxu0 0.0
    %568 = vmatprep.subr.mxu0 0.0
    %569 = vmatpush1.msra.mxu0 0.0
    %570 = vmatprep.subr.mxu0 0.0
    %571 = vmatpush1.msra.mxu0 0.0
    %572 = vmatprep.subr.mxu0 0.0
    %573 = vmatpush1.msra.mxu0 0.0
    %574 = vmatprep.subr.mxu0 0.0
    %575 = vmatpush1.msra.mxu0 0.0
    %576 = vmatprep.subr.mxu0 0.0
    %577 = vmatpush1.msra.mxu0 0.0
    %578 = vmatprep.subr.mxu0 0.0
    %579 = vmatpush1.msra.mxu0 0.0
    %580 = vmatprep.subr.mxu0 0.0
    %581 = vmatpush1.msra.mxu0 0.0
    %582 = vmatprep.mubr.f32.mxu0 0.0
    %583 = vmatmul.mubr.f32.gmra.mrb[0].mxu0 %v513
    %v584 = vpop.f32.mrb[0].mxu0
    %v585 = vadd.f32 0.0, %v584
    %v586 = vpop.f32.mrb[0].mxu0
    %587 = vmatprep.mubr.f32.mxu0 0.0
    %588 = vmatmul.mubr.f32.gmra.mrb[0].mxu0 %v516
    %v589 = vpop.f32.mrb[0].mxu0
    %v590 = vadd.f32 0.0, %v589
    %v591 = vpop.f32.mrb[0].mxu0
    %592 = vdwg.mxu0
    %601 = vrot.lane.b32.xlu0 %v370, 64
    %v602 = vpop.permute.xlu0 %601
    %603 = vrot.lane.b32.xlu0 %v371, 64
    %v604 = vpop.permute.xlu0 %603
    %605 = vrot.lane.b32.xlu0 %v372, 64
    %v606 = vpop.permute.xlu0 %605
    %607 = vrot.lane.b32.xlu0 %v373, 64
    %v608 = vpop.permute.xlu0 %607
    %609 = vrot.lane.b32.xlu0 %v374, 64
    %v610 = vpop.permute.xlu0 %609
    %611 = vrot.lane.b32.xlu0 %v375, 64
    %v612 = vpop.permute.xlu0 %611
    %613 = vrot.lane.b32.xlu0 %v376, 64
    %v614 = vpop.permute.xlu0 %613
    %615 = vrot.lane.b32.xlu0 %v377, 64
    %v616 = vpop.permute.xlu0 %615
    %625 = vmatprep.subr.mxu0 0.0
    %626 = vmatpush1.msra.mxu0 %v602
    %627 = vmatprep.subr.mxu0 0.0
    %628 = vmatpush1.msra.mxu0 %v604
    %629 = vmatprep.subr.mxu0 0.0
    %630 = vmatpush1.msra.mxu0 %v606
    %631 = vmatprep.subr.mxu0 0.0
    %632 = vmatpush1.msra.mxu0 %v608
    %633 = vmatprep.subr.mxu0 0.0
    %634 = vmatpush1.msra.mxu0 %v610
    %635 = vmatprep.subr.mxu0 0.0
    %636 = vmatpush1.msra.mxu0 %v612
    %637 = vmatprep.subr.mxu0 0.0
    %638 = vmatpush1.msra.mxu0 %v614
    %639 = vmatprep.subr.mxu0 0.0
    %640 = vmatpush1.msra.mxu0 %v616
    %641 = vmatprep.subr.mxu0 0.0
    %642 = vmatpush1.msra.mxu0 0.0
    %643 = vmatprep.subr.mxu0 0.0
    %644 = vmatpush1.msra.mxu0 0.0
    %645 = vmatprep.subr.mxu0 0.0
    %646 = vmatpush1.msra.mxu0 0.0
    %647 = vmatprep.subr.mxu0 0.0
    %648 = vmatpush1.msra.mxu0 0.0
    %649 = vmatprep.subr.mxu0 0.0
    %650 = vmatpush1.msra.mxu0 0.0
    %651 = vmatprep.subr.mxu0 0.0
    %652 = vmatpush1.msra.mxu0 0.0
    %653 = vmatprep.subr.mxu0 0.0
    %654 = vmatpush1.msra.mxu0 0.0
    %655 = vmatprep.subr.mxu0 0.0
    %656 = vmatpush1.msra.mxu0 0.0
    %657 = vmatprep.subr.mxu0 0.0
    %658 = vmatpush1.msra.mxu0 0.0
    %659 = vmatprep.subr.mxu0 0.0
    %660 = vmatpush1.msra.mxu0 0.0
    %661 = vmatprep.subr.mxu0 0.0
    %662 = vmatpush1.msra.mxu0 0.0
    %663 = vmatprep.subr.mxu0 0.0
    %664 = vmatpush1.msra.mxu0 0.0
    %665 = vmatprep.subr.mxu0 0.0
    %666 = vmatpush1.msra.mxu0 0.0
    %667 = vmatprep.subr.mxu0 0.0
    %668 = vmatpush1.msra.mxu0 0.0
    %669 = vmatprep.subr.mxu0 0.0
    %670 = vmatpush1.msra.mxu0 0.0
    %671 = vmatprep.subr.mxu0 0.0
    %672 = vmatpush1.msra.mxu0 0.0
    %673 = vmatprep.subr.mxu0 0.0
    %674 = vmatpush1.msra.mxu0 0.0
    %675 = vmatprep.subr.mxu0 0.0
    %676 = vmatpush1.msra.mxu0 0.0
    %677 = vmatprep.subr.mxu0 0.0
    %678 = vmatpush1.msra.mxu0 0.0
    %679 = vmatprep.subr.mxu0 0.0
    %680 = vmatpush1.msra.mxu0 0.0
    %681 = vmatprep.subr.mxu0 0.0
    %682 = vmatpush1.msra.mxu0 0.0
    %683 = vmatprep.subr.mxu0 0.0
    %684 = vmatpush1.msra.mxu0 0.0
    %685 = vmatprep.subr.mxu0 0.0
    %686 = vmatpush1.msra.mxu0 0.0
    %687 = vmatprep.subr.mxu0 0.0
    %688 = vmatpush1.msra.mxu0 0.0
    %689 = vmatprep.mubr.f32.mxu0 0.0
    %690 = vmatmul.mubr.f32.gmra.mrb[0].mxu0 %v513
    %v691 = vpop.f32.mrb[0].mxu0
    %v692 = vadd.f32 0.0, %v691
    %v693 = vpop.f32.mrb[0].mxu0
    %694 = vmatprep.mubr.f32.mxu0 0.0
    %695 = vmatmul.mubr.f32.gmra.mrb[0].mxu0 %v516
    %v696 = vpop.f32.mrb[0].mxu0
    %v697 = vadd.f32 0.0, %v696
    %v698 = vpop.f32.mrb[0].mxu0
    %699 = vdwg.mxu0
    %v700 = vrcp.pop %v585
    %v701 = vrcp.pop %v590
    %v702 = vmul.f32 %v692, %v700
    %v703 = vmul.f32 %v697, %v701
    %v704 = vlaneseq
    %v705 = vshrl.u32 %v704, 7
    %v706 = vsub.s32 1, %v705
    %v707 = vrot.slane %v183, %v706
    %v709 = vsel %vm188, %v702, 0
    %v712 = vsel %vm188, %v703, 0
    %v715 = vsel %vm188, %v167, 0
    %v718 = vsel %vm188, %v168, 0
    %v721 = vsel %vm188, %v169, 0
    %v724 = vsel %vm188, %v170, 0
    %726 = vmatprep.subr.mxu0 0.0
    %727 = vmatpush1.xpose.msra.mxu0 %v715
    %728 = vmatprep.subr.mxu0 0.0
    %729 = vmatpush1.xpose.msra.mxu0 %v718
    %730 = vmatprep.subr.mxu0 0.0
    %731 = vmatpush1.xpose.msra.mxu0 %v721
    %732 = vmatprep.subr.mxu0 0.0
    %733 = vmatpush1.xpose.msra.mxu0 %v724
    %734 = vmatprep.subr.mxu0 0.0
    %735 = vmatpush1.xpose.msra.mxu0 0.0
    %736 = vmatprep.subr.mxu0 0.0
    %737 = vmatpush1.xpose.msra.mxu0 0.0
    %738 = vmatprep.subr.mxu0 0.0
    %739 = vmatpush1.xpose.msra.mxu0 0.0
    %740 = vmatprep.subr.mxu0 0.0
    %741 = vmatpush1.xpose.msra.mxu0 0.0
    %742 = vmatprep.subr.mxu0 0.0
    %743 = vmatpush1.xpose.msra.mxu0 0.0
    %744 = vmatprep.subr.mxu0 0.0
    %745 = vmatpush1.xpose.msra.mxu0 0.0
    %746 = vmatprep.subr.mxu0 0.0
    %747 = vmatpush1.xpose.msra.mxu0 0.0
    %748 = vmatprep.subr.mxu0 0.0
    %749 = vmatpush1.xpose.msra.mxu0 0.0
    %750 = vmatprep.subr.mxu0 0.0
    %751 = vmatpush1.xpose.msra.mxu0 0.0
    %752 = vmatprep.subr.mxu0 0.0
    %753 = vmatpush1.xpose.msra.mxu0 0.0
    %754 = vmatprep.subr.mxu0 0.0
    %755 = vmatpush1.xpose.msra.mxu0 0.0
    %756 = vmatprep.subr.mxu0 0.0
    %757 = vmatpush1.xpose.msra.mxu0 0.0
    %758 = vmatprep.subr.mxu0 0.0
    %759 = vmatpush1.xpose.msra.mxu0 0.0
    %760 = vmatprep.subr.mxu0 0.0
    %761 = vmatpush1.xpose.msra.mxu0 0.0
    %762 = vmatprep.subr.mxu0 0.0
    %763 = vmatpush1.xpose.msra.mxu0 0.0
    %764 = vmatprep.subr.mxu0 0.0
    %765 = vmatpush1.xpose.msra.mxu0 0.0
    %766 = vmatprep.subr.mxu0 0.0
    %767 = vmatpush1.xpose.msra.mxu0 0.0
    %768 = vmatprep.subr.mxu0 0.0
    %769 = vmatpush1.xpose.msra.mxu0 0.0
    %770 = vmatprep.subr.mxu0 0.0
    %771 = vmatpush1.xpose.msra.mxu0 0.0
    %772 = vmatprep.subr.mxu0 0.0
    %773 = vmatpush1.xpose.msra.mxu0 0.0
    %774 = vmatprep.subr.mxu0 0.0
    %775 = vmatpush1.xpose.msra.mxu0 0.0
    %776 = vmatprep.subr.mxu0 0.0
    %777 = vmatpush1.xpose.msra.mxu0 0.0
    %778 = vmatprep.subr.mxu0 0.0
    %779 = vmatpush1.xpose.msra.mxu0 0.0
    %780 = vmatprep.subr.mxu0 0.0
    %781 = vmatpush1.xpose.msra.mxu0 0.0
    %782 = vmatprep.subr.mxu0 0.0
    %783 = vmatpush1.xpose.msra.mxu0 0.0
    %784 = vmatprep.subr.mxu0 0.0
    %785 = vmatpush1.xpose.msra.mxu0 0.0
    %786 = vmatprep.subr.mxu0 0.0
    %787 = vmatpush1.xpose.msra.mxu0 0.0
    %788 = vmatprep.subr.mxu0 0.0
    %789 = vmatpush1.xpose.msra.mxu0 0.0
    %790 = vmatprep.mubr.f32.mxu0 0.0
    %791 = vmatmul.mubr.f32.gmra.mrb[0].mxu0 %v709
    %v792 = vpop.f32.mrb[0].mxu0
    %v793 = vadd.f32 %v707, %v792
    %v794 = vpop.f32.mrb[0].mxu0
    %795 = vmatprep.mubr.f32.mxu0 0.0
    %796 = vmatmul.mubr.f32.gmra.mrb[0].mxu0 %v712
    %v797 = vpop.f32.mrb[0].mxu0
    %v798 = vadd.f32 %v707, %v797
    %v799 = vpop.f32.mrb[0].mxu0
    %800 = vdwg.mxu0
    %v801 = vadd.f32 %v137, %v793
    %v802 = vadd.f32 %v142, %v798
    %v803 = vsel %vm188, %v801, 0.0
    %804 = vadd.xlane.f32.xlu0 %v803
    %v805 = vpop.xlane.xlu0 %804
    %v806 = vsel %vm188, %v802, 0.0
    %807 = vadd.xlane.f32.xlu0 %v806
    %v808 = vpop.xlane.xlu0 %807
    %v809 = vrcp.pop 32.0
    %v810 = vmul.f32 %v805, %v809
    %v811 = vmul.f32 %v808, %v809
    %v812 = vsub.f32 %v801, %v810
    %v813 = vsub.f32 %v802, %v811
    %v814 = vmul.f32 %v812, %v812
    %v815 = vmul.f32 %v813, %v813
    %v816 = vsel %vm188, %v814, 0.0
    %817 = vadd.xlane.f32.xlu0 %v816
    %v818 = vpop.xlane.xlu0 %817
    %v819 = vsel %vm188, %v815, 0.0
    %820 = vadd.xlane.f32.xlu0 %v819
    %v821 = vpop.xlane.xlu0 %820
    %v822 = vmul.f32 %v818, %v809
    %v823 = vmul.f32 %v821, %v809
    %v824 = vadd.f32 %v822, 1e-05
    %v825 = vadd.f32 %v823, 1e-05
    %v826 = vrsqrt.pop %v824
    %v827 = vrsqrt.pop %v825
    %v828 = vmul.f32 %v812, %v826
    %v829 = vmul.f32 %v813, %v827
    %v830 = vlaneseq
    %v831 = vshrl.u32 %v830, 7
    %v832 = vsub.s32 2, %v831
    %v833 = vrot.slane %v183, %v832
    %v834 = vmul.f32 %v828, %v833
    %v835 = vmul.f32 %v829, %v833
    %v836 = vlaneseq
    %v837 = vshrl.u32 %v836, 7
    %v838 = vsub.s32 3, %v837
    %v839 = vrot.slane %v183, %v838
    %v840 = vadd.f32 %v834, %v839
    %v841 = vadd.f32 %v835, %v839
    %v842 = vlaneseq
    %v843 = vshrl.u32 %v842, 7
    %v844 = vsub.s32 4, %v843
    %v845 = vrot.slane %v183, %v844
    %v847 = vsel %vm188, %v840, 0
    %v850 = vsel %vm188, %v841, 0
    %v853 = vsel %vm188, %v171, 0
    %v856 = vsel %vm188, %v172, 0
    %v859 = vsel %vm188, %v173, 0
    %v862 = vsel %vm188, %v174, 0
    %v865 = vsel %vm188, %v175, 0
    %v868 = vsel %vm188, %v176, 0
    %v871 = vsel %vm188, %v177, 0
    %v874 = vsel %vm188, %v178, 0
    %876 = vmatprep.subr.mxu0 0.0
    %877 = vmatpush1.xpose.msra.mxu0 %v853
    %878 = vmatprep.subr.mxu0 0.0
    %879 = vmatpush1.xpose.msra.mxu0 %v856
    %880 = vmatprep.subr.mxu0 0.0
    %881 = vmatpush1.xpose.msra.mxu0 %v859
    %882 = vmatprep.subr.mxu0 0.0
    %883 = vmatpush1.xpose.msra.mxu0 %v862
    %884 = vmatprep.subr.mxu0 0.0
    %885 = vmatpush1.xpose.msra.mxu0 %v865
    %886 = vmatprep.subr.mxu0 0.0
    %887 = vmatpush1.xpose.msra.mxu0 %v868
    %888 = vmatprep.subr.mxu0 0.0
    %889 = vmatpush1.xpose.msra.mxu0 %v871
    %890 = vmatprep.subr.mxu0 0.0
    %891 = vmatpush1.xpose.msra.mxu0 %v874
    %892 = vmatprep.subr.mxu0 0.0
    %893 = vmatpush1.xpose.msra.mxu0 0.0
    %894 = vmatprep.subr.mxu0 0.0
    %895 = vmatpush1.xpose.msra.mxu0 0.0
    %896 = vmatprep.subr.mxu0 0.0
    %897 = vmatpush1.xpose.msra.mxu0 0.0
    %898 = vmatprep.subr.mxu0 0.0
    %899 = vmatpush1.xpose.msra.mxu0 0.0
    %900 = vmatprep.subr.mxu0 0.0
    %901 = vmatpush1.xpose.msra.mxu0 0.0
    %902 = vmatprep.subr.mxu0 0.0
    %903 = vmatpush1.xpose.msra.mxu0 0.0
    %904 = vmatprep.subr.mxu0 0.0
    %905 = vmatpush1.xpose.msra.mxu0 0.0
    %906 = vmatprep.subr.mxu0 0.0
    %907 = vmatpush1.xpose.msra.mxu0 0.0
    %908 = vmatprep.subr.mxu0 0.0
    %909 = vmatpush1.xpose.msra.mxu0 0.0
    %910 = vmatprep.subr.mxu0 0.0
    %911 = vmatpush1.xpose.msra.mxu0 0.0
    %912 = vmatprep.subr.mxu0 0.0
    %913 = vmatpush1.xpose.msra.mxu0 0.0
    %914 = vmatprep.subr.mxu0 0.0
    %915 = vmatpush1.xpose.msra.mxu0 0.0
    %916 = vmatprep.subr.mxu0 0.0
    %917 = vmatpush1.xpose.msra.mxu0 0.0
    %918 = vmatprep.subr.mxu0 0.0
    %919 = vmatpush1.xpose.msra.mxu0 0.0
    %920 = vmatprep.subr.mxu0 0.0
    %921 = vmatpush1.xpose.msra.mxu0 0.0
    %922 = vmatprep.subr.mxu0 0.0
    %923 = vmatpush1.xpose.msra.mxu0 0.0
    %924 = vmatprep.subr.mxu0 0.0
    %925 = vmatpush1.xpose.msra.mxu0 0.0
    %926 = vmatprep.subr.mxu0 0.0
    %927 = vmatpush1.xpose.msra.mxu0 0.0
    %928 = vmatprep.subr.mxu0 0.0
    %929 = vmatpush1.xpose.msra.mxu0 0.0
    %930 = vmatprep.subr.mxu0 0.0
    %931 = vmatpush1.xpose.msra.mxu0 0.0
    %932 = vmatprep.subr.mxu0 0.0
    %933 = vmatpush1.xpose.msra.mxu0 0.0
    %934 = vmatprep.subr.mxu0 0.0
    %935 = vmatpush1.xpose.msra.mxu0 0.0
    %936 = vmatprep.subr.mxu0 0.0
    %937 = vmatpush1.xpose.msra.mxu0 0.0
    %938 = vmatprep.subr.mxu0 0.0
    %939 = vmatpush1.xpose.msra.mxu0 0.0
    %940 = vmatprep.mubr.f32.mxu0 0.0
    %941 = vmatmul.mubr.f32.gmra.mrb[0].mxu0 %v847
    %v942 = vpop.f32.mrb[0].mxu0
    %v943 = vadd.f32 %v845, %v942
    %v944 = vpop.f32.mrb[0].mxu0
    %945 = vmatprep.mubr.f32.mxu0 0.0
    %946 = vmatmul.mubr.f32.gmra.mrb[0].mxu0 %v850
    %v947 = vpop.f32.mrb[0].mxu0
    %v948 = vadd.f32 %v845, %v947
    %v949 = vpop.f32.mrb[0].mxu0
    %950 = vdwg.mxu0
    %v951 = vmax.f32 %v943, 0.0
    %v952 = vmax.f32 %v948, 0.0
    %v953 = vlaneseq
    %v954 = vshrl.u32 %v953, 7
    %v955 = vsub.s32 5, %v954
    %v956 = vrot.slane %v183, %v955
    %v958 = vsel %vm499, %v951, 0
    %v961 = vsel %vm499, %v952, 0
    %v964 = vsel %vm499, %v179, 0
    %v967 = vsel %vm499, %v180, 0
    %v970 = vsel %vm499, %v181, 0
    %v973 = vsel %vm499, %v182, 0
    %975 = vmatprep.subr.mxu0 0.0
    %976 = vmatpush1.xpose.msra.mxu0 %v964
    %977 = vmatprep.subr.mxu0 0.0
    %978 = vmatpush1.xpose.msra.mxu0 %v967
    %979 = vmatprep.subr.mxu0 0.0
    %980 = vmatpush1.xpose.msra.mxu0 %v970
    %981 = vmatprep.subr.mxu0 0.0
    %982 = vmatpush1.xpose.msra.mxu0 %v973
    %983 = vmatprep.subr.mxu0 0.0
    %984 = vmatpush1.xpose.msra.mxu0 0.0
    %985 = vmatprep.subr.mxu0 0.0
    %986 = vmatpush1.xpose.msra.mxu0 0.0
    %987 = vmatprep.subr.mxu0 0.0
    %988 = vmatpush1.xpose.msra.mxu0 0.0
    %989 = vmatprep.subr.mxu0 0.0
    %990 = vmatpush1.xpose.msra.mxu0 0.0
    %991 = vmatprep.subr.mxu0 0.0
    %992 = vmatpush1.xpose.msra.mxu0 0.0
    %993 = vmatprep.subr.mxu0 0.0
    %994 = vmatpush1.xpose.msra.mxu0 0.0
    %995 = vmatprep.subr.mxu0 0.0
    %996 = vmatpush1.xpose.msra.mxu0 0.0
    %997 = vmatprep.subr.mxu0 0.0
    %998 = vmatpush1.xpose.msra.mxu0 0.0
    %999 = vmatprep.subr.mxu0 0.0
    %1000 = vmatpush1.xpose.msra.mxu0 0.0
    %1001 = vmatprep.subr.mxu0 0.0
    %1002 = vmatpush1.xpose.msra.mxu0 0.0
    %1003 = vmatprep.subr.mxu0 0.0
    %1004 = vmatpush1.xpose.msra.mxu0 0.0
    %1005 = vmatprep.subr.mxu0 0.0
    %1006 = vmatpush1.xpose.msra.mxu0 0.0
    %1007 = vmatprep.subr.mxu0 0.0
    %1008 = vmatpush1.xpose.msra.mxu0 0.0
    %1009 = vmatprep.subr.mxu0 0.0
    %1010 = vmatpush1.xpose.msra.mxu0 0.0
    %1011 = vmatprep.subr.mxu0 0.0
    %1012 = vmatpush1.xpose.msra.mxu0 0.0
    %1013 = vmatprep.subr.mxu0 0.0
    %1014 = vmatpush1.xpose.msra.mxu0 0.0
    %1015 = vmatprep.subr.mxu0 0.0
    %1016 = vmatpush1.xpose.msra.mxu0 0.0
    %1017 = vmatprep.subr.mxu0 0.0
    %1018 = vmatpush1.xpose.msra.mxu0 0.0
    %1019 = vmatprep.subr.mxu0 0.0
    %1020 = vmatpush1.xpose.msra.mxu0 0.0
    %1021 = vmatprep.subr.mxu0 0.0
    %1022 = vmatpush1.xpose.msra.mxu0 0.0
    %1023 = vmatprep.subr.mxu0 0.0
    %1024 = vmatpush1.xpose.msra.mxu0 0.0
    %1025 = vmatprep.subr.mxu0 0.0
    %1026 = vmatpush1.xpose.msra.mxu0 0.0
    %1027 = vmatprep.subr.mxu0 0.0
    %1028 = vmatpush1.xpose.msra.mxu0 0.0
    %1029 = vmatprep.subr.mxu0 0.0
    %1030 = vmatpush1.xpose.msra.mxu0 0.0
    %1031 = vmatprep.subr.mxu0 0.0
    %1032 = vmatpush1.xpose.msra.mxu0 0.0
    %1033 = vmatprep.subr.mxu0 0.0
    %1034 = vmatpush1.xpose.msra.mxu0 0.0
    %1035 = vmatprep.subr.mxu0 0.0
    %1036 = vmatpush1.xpose.msra.mxu0 0.0
    %1037 = vmatprep.subr.mxu0 0.0
    %1038 = vmatpush1.xpose.msra.mxu0 0.0
    %1039 = vmatprep.mubr.f32.mxu0 0.0
    %1040 = vmatmul.mubr.f32.gmra.mrb[0].mxu0 %v958
    %v1041 = vpop.f32.mrb[0].mxu0
    %v1042 = vadd.f32 %v956, %v1041
    %v1043 = vpop.f32.mrb[0].mxu0
    %1044 = vmatprep.mubr.f32.mxu0 0.0
    %1045 = vmatmul.mubr.f32.gmra.mrb[0].mxu0 %v961
    %v1046 = vpop.f32.mrb[0].mxu0
    %v1047 = vadd.f32 %v956, %v1046
    %v1048 = vpop.f32.mrb[0].mxu0
    %1049 = vdwg.mxu0
    %v1050 = vadd.f32 %v840, %v1042
    %v1051 = vadd.f32 %v841, %v1047
    %v1052 = vsel %vm188, %v1050, 0.0
    %1053 = vadd.xlane.f32.xlu0 %v1052
    %v1054 = vpop.xlane.xlu0 %1053
    %v1055 = vsel %vm188, %v1051, 0.0
    %1056 = vadd.xlane.f32.xlu0 %v1055
    %v1057 = vpop.xlane.xlu0 %1056
    %v1058 = vmul.f32 %v1054, %v809
    %v1059 = vmul.f32 %v1057, %v809
    %v1060 = vsub.f32 %v1050, %v1058
    %v1061 = vsub.f32 %v1051, %v1059
    %v1062 = vmul.f32 %v1060, %v1060
    %v1063 = vmul.f32 %v1061, %v1061
    %v1064 = vsel %vm188, %v1062, 0.0
    %1065 = vadd.xlane.f32.xlu0 %v1064
    %v1066 = vpop.xlane.xlu0 %1065
    %v1067 = vsel %vm188, %v1063, 0.0
    %1068 = vadd.xlane.f32.xlu0 %v1067
    %v1069 = vpop.xlane.xlu0 %1068
    %v1070 = vmul.f32 %v1066, %v809
    %v1071 = vmul.f32 %v1069, %v809
    %v1072 = vadd.f32 %v1070, 1e-05
    %v1073 = vadd.f32 %v1071, 1e-05
    %v1074 = vrsqrt.pop %v1072
    %v1075 = vrsqrt.pop %v1073
    %v1076 = vmul.f32 %v1060, %v1074
    %v1077 = vmul.f32 %v1061, %v1075
    %v1078 = vlaneseq
    %v1079 = vshrl.u32 %v1078, 7
    %v1080 = vsub.s32 6, %v1079
    %v1081 = vrot.slane %v183, %v1080
    %v1082 = vmul.f32 %v1076, %v1081
    %v1083 = vmul.f32 %v1077, %v1081
    %v1084 = vlaneseq
    %v1085 = vshrl.u32 %v1084, 7
    %v1086 = vsub.s32 7, %v1085
    %v1087 = vrot.slane %v183, %v1086
    %v1088 = vadd.f32 %v1082, %v1087
    %v1089 = vadd.f32 %v1083, %v1087
    %s1090 = scalar_lea.vmem %s5, 96
    %v1091 = vld [vmem:[%s1090] sm:$0xff]
    %v1092 = vld [vmem:[%s1090 + $0x8] sm:$0xff]
    %v1093 = vld [vmem:[%s1090 + $0x10] sm:$0xff]
    %v1094 = vld [vmem:[%s1090 + $0x18] sm:$0xff]
    %v1095 = vld [vmem:[%s1090 + $0x20] sm:$0xff]
    %v1096 = vld [vmem:[%s1090 + $0x28] sm:$0xff]
    %v1097 = vld [vmem:[%s1090 + $0x30] sm:$0xff]
    %v1098 = vld [vmem:[%s1090 + $0x38] sm:$0xff]
    %v1099 = vld [vmem:[%s1090 + $0x40] sm:$0xff]
    %v1100 = vld [vmem:[%s1090 + $0x48] sm:$0xff]
    %v1101 = vld [vmem:[%s1090 + $0x50] sm:$0xff]
    %v1102 = vld [vmem:[%s1090 + $0x58] sm:$0xff]
    %s1103 = scalar_lea.vmem %s6, 32
    %v1104 = vld [vmem:[%s1103] sm:$0xff]
    %v1105 = vld [vmem:[%s1103 + $0x8] sm:$0xff]
    %v1106 = vld [vmem:[%s1103 + $0x10] sm:$0xff]
    %v1107 = vld [vmem:[%s1103 + $0x18] sm:$0xff]
    %s1108 = scalar_lea.vmem %s7, 64
    %v1109 = vld [vmem:[%s1108] sm:$0xff]
    %v1110 = vld [vmem:[%s1108 + $0x8] sm:$0xff]
    %v1111 = vld [vmem:[%s1108 + $0x10] sm:$0xff]
    %v1112 = vld [vmem:[%s1108 + $0x18] sm:$0xff]
    %v1113 = vld [vmem:[%s1108 + $0x20] sm:$0xff]
    %v1114 = vld [vmem:[%s1108 + $0x28] sm:$0xff]
    %v1115 = vld [vmem:[%s1108 + $0x30] sm:$0xff]
    %v1116 = vld [vmem:[%s1108 + $0x38] sm:$0xff]
    %s1117 = scalar_lea.vmem %s8, 32
    %v1118 = vld [vmem:[%s1117] sm:$0xff]
    %v1119 = vld [vmem:[%s1117 + $0x8] sm:$0xff]
    %v1120 = vld [vmem:[%s1117 + $0x10] sm:$0xff]
    %v1121 = vld [vmem:[%s1117 + $0x18] sm:$0xff]
    %s1122 = scalar_lea.vmem %s9, 8
    %v1123 = vld [vmem:[%s1122] sm:$0xff]
    %v1124 = vlaneseq
    %v1125 = vshrl.u32 %v1124, 7
    %v1126 = vsub.s32 0, %v1125
    %v1127 = vrot.slane %v1123, %v1126
    %v1129 = vsel %vm188, %v1088, 0
    %v1132 = vsel %vm188, %v1089, 0
    %v1135 = vsel %vm188, %v1091, 0
    %v1138 = vsel %vm188, %v1092, 0
    %v1141 = vsel %vm188, %v1093, 0
    %v1144 = vsel %vm188, %v1094, 0
    %v1147 = vsel %vm188, %v1095, 0
    %v1150 = vsel %vm188, %v1096, 0
    %v1153 = vsel %vm188, %v1097, 0
    %v1156 = vsel %vm188, %v1098, 0
    %v1159 = vsel %vm188, %v1099, 0
    %v1162 = vsel %vm188, %v1100, 0
    %v1165 = vsel %vm188, %v1101, 0
    %v1168 = vsel %vm188, %v1102, 0
    %1170 = vmatprep.subr.mxu0 0.0
    %1171 = vmatpush1.xpose.msra.mxu0 %v1135
    %1172 = vmatprep.subr.mxu0 0.0
    %1173 = vmatpush1.xpose.msra.mxu0 %v1138
    %1174 = vmatprep.subr.mxu0 0.0
    %1175 = vmatpush1.xpose.msra.mxu0 %v1141
    %1176 = vmatprep.subr.mxu0 0.0
    %1177 = vmatpush1.xpose.msra.mxu0 %v1144
    %1178 = vmatprep.subr.mxu0 0.0
    %1179 = vmatpush1.xpose.msra.mxu0 %v1147
    %1180 = vmatprep.subr.mxu0 0.0
    %1181 = vmatpush1.xpose.msra.mxu0 %v1150
    %1182 = vmatprep.subr.mxu0 0.0
    %1183 = vmatpush1.xpose.msra.mxu0 %v1153
    %1184 = vmatprep.subr.mxu0 0.0
    %1185 = vmatpush1.xpose.msra.mxu0 %v1156
    %1186 = vmatprep.subr.mxu0 0.0
    %1187 = vmatpush1.xpose.msra.mxu0 %v1159
    %1188 = vmatprep.subr.mxu0 0.0
    %1189 = vmatpush1.xpose.msra.mxu0 %v1162
    %1190 = vmatprep.subr.mxu0 0.0
    %1191 = vmatpush1.xpose.msra.mxu0 %v1165
    %1192 = vmatprep.subr.mxu0 0.0
    %1193 = vmatpush1.xpose.msra.mxu0 %v1168
    %1194 = vmatprep.subr.mxu0 0.0
    %1195 = vmatpush1.xpose.msra.mxu0 0.0
    %1196 = vmatprep.subr.mxu0 0.0
    %1197 = vmatpush1.xpose.msra.mxu0 0.0
    %1198 = vmatprep.subr.mxu0 0.0
    %1199 = vmatpush1.xpose.msra.mxu0 0.0
    %1200 = vmatprep.subr.mxu0 0.0
    %1201 = vmatpush1.xpose.msra.mxu0 0.0
    %1202 = vmatprep.subr.mxu0 0.0
    %1203 = vmatpush1.xpose.msra.mxu0 0.0
    %1204 = vmatprep.subr.mxu0 0.0
    %1205 = vmatpush1.xpose.msra.mxu0 0.0
    %1206 = vmatprep.subr.mxu0 0.0
    %1207 = vmatpush1.xpose.msra.mxu0 0.0
    %1208 = vmatprep.subr.mxu0 0.0
    %1209 = vmatpush1.xpose.msra.mxu0 0.0
    %1210 = vmatprep.subr.mxu0 0.0
    %1211 = vmatpush1.xpose.msra.mxu0 0.0
    %1212 = vmatprep.subr.mxu0 0.0
    %1213 = vmatpush1.xpose.msra.mxu0 0.0
    %1214 = vmatprep.subr.mxu0 0.0
    %1215 = vmatpush1.xpose.msra.mxu0 0.0
    %1216 = vmatprep.subr.mxu0 0.0
    %1217 = vmatpush1.xpose.msra.mxu0 0.0
    %1218 = vmatprep.subr.mxu0 0.0
    %1219 = vmatpush1.xpose.msra.mxu0 0.0
    %1220 = vmatprep.subr.mxu0 0.0
    %1221 = vmatpush1.xpose.msra.mxu0 0.0
    %1222 = vmatprep.subr.mxu0 0.0
    %1223 = vmatpush1.xpose.msra.mxu0 0.0
    %1224 = vmatprep.subr.mxu0 0.0
    %1225 = vmatpush1.xpose.msra.mxu0 0.0
    %1226 = vmatprep.subr.mxu0 0.0
    %1227 = vmatpush1.xpose.msra.mxu0 0.0
    %1228 = vmatprep.subr.mxu0 0.0
    %1229 = vmatpush1.xpose.msra.mxu0 0.0
    %1230 = vmatprep.subr.mxu0 0.0
    %1231 = vmatpush1.xpose.msra.mxu0 0.0
    %1232 = vmatprep.subr.mxu0 0.0
    %1233 = vmatpush1.xpose.msra.mxu0 0.0
    %1234 = vmatprep.mubr.f32.mxu0 0.0
    %1235 = vmatmul.mubr.f32.gmra.mrb[0].mxu0 %v1129
    %v1236 = vpop.f32.mrb[0].mxu0
    %v1237 = vadd.f32 %v1127, %v1236
    %v1238 = vpop.f32.mrb[0].mxu0
    %1239 = vmatprep.mubr.f32.mxu0 0.0
    %1240 = vmatmul.mubr.f32.gmra.mrb[0].mxu0 %v1132
    %v1241 = vpop.f32.mrb[0].mxu0
    %v1242 = vadd.f32 %v1127, %v1241
    %v1243 = vpop.f32.mrb[0].mxu0
    %1244 = vdwg.mxu0
    %v1245 = vmul.f32 %v1237, %v315
    %v1246 = vmul.f32 %v1242, %v317
    %v1247 = vmul.f32 %v1237, %v319
    %v1248 = vmul.f32 %v1242, %v321
    %v1249 = vmul.f32 %v1237, %v323
    %v1250 = vmul.f32 %v1242, %v325
    %v1251 = vmul.f32 %v1237, %v327
    %v1252 = vmul.f32 %v1242, %v329
    %v1253 = vmul.f32 %v1237, %v347
    %v1254 = vmul.f32 %v1242, %v349
    %v1255 = vmul.f32 %v1237, %v351
    %v1256 = vmul.f32 %v1242, %v353
    %v1257 = vmul.f32 %v1237, %v355
    %v1258 = vmul.f32 %v1242, %v357
    %v1259 = vmul.f32 %v1237, %v359
    %v1260 = vmul.f32 %v1242, %v361
    %1269 = vrot.lane.b32.xlu0 %v1245, 96
    %v1270 = vpop.permute.xlu0 %1269
    %1271 = vrot.lane.b32.xlu0 %v1246, 96
    %v1272 = vpop.permute.xlu0 %1271
    %1273 = vrot.lane.b32.xlu0 %v1247, 96
    %v1274 = vpop.permute.xlu0 %1273
    %1275 = vrot.lane.b32.xlu0 %v1248, 96
    %v1276 = vpop.permute.xlu0 %1275
    %1277 = vrot.lane.b32.xlu0 %v1249, 96
    %v1278 = vpop.permute.xlu0 %1277
    %1279 = vrot.lane.b32.xlu0 %v1250, 96
    %v1280 = vpop.permute.xlu0 %1279
    %1281 = vrot.lane.b32.xlu0 %v1251, 96
    %v1282 = vpop.permute.xlu0 %1281
    %1283 = vrot.lane.b32.xlu0 %v1252, 96
    %v1284 = vpop.permute.xlu0 %1283
    %v1286 = vsel %vm188, %v1237, 0
    %v1289 = vsel %vm188, %v1242, 0
    %v1291 = vsel %vm188, %v1270, 0
    %v1293 = vsel %vm188, %v1272, 0
    %v1295 = vsel %vm188, %v1274, 0
    %v1297 = vsel %vm188, %v1276, 0
    %v1299 = vsel %vm188, %v1278, 0
    %v1301 = vsel %vm188, %v1280, 0
    %v1303 = vsel %vm188, %v1282, 0
    %v1305 = vsel %vm188, %v1284, 0
    %1307 = vmatprep.subr.mxu0 0.0
    %1308 = vmatpush1.xpose.msra.mxu0 %v1291
    %1309 = vmatprep.subr.mxu0 0.0
    %1310 = vmatpush1.xpose.msra.mxu0 %v1293
    %1311 = vmatprep.subr.mxu0 0.0
    %1312 = vmatpush1.xpose.msra.mxu0 %v1295
    %1313 = vmatprep.subr.mxu0 0.0
    %1314 = vmatpush1.xpose.msra.mxu0 %v1297
    %1315 = vmatprep.subr.mxu0 0.0
    %1316 = vmatpush1.xpose.msra.mxu0 %v1299
    %1317 = vmatprep.subr.mxu0 0.0
    %1318 = vmatpush1.xpose.msra.mxu0 %v1301
    %1319 = vmatprep.subr.mxu0 0.0
    %1320 = vmatpush1.xpose.msra.mxu0 %v1303
    %1321 = vmatprep.subr.mxu0 0.0
    %1322 = vmatpush1.xpose.msra.mxu0 %v1305
    %1323 = vmatprep.subr.mxu0 0.0
    %1324 = vmatpush1.xpose.msra.mxu0 0.0
    %1325 = vmatprep.subr.mxu0 0.0
    %1326 = vmatpush1.xpose.msra.mxu0 0.0
    %1327 = vmatprep.subr.mxu0 0.0
    %1328 = vmatpush1.xpose.msra.mxu0 0.0
    %1329 = vmatprep.subr.mxu0 0.0
    %1330 = vmatpush1.xpose.msra.mxu0 0.0
    %1331 = vmatprep.subr.mxu0 0.0
    %1332 = vmatpush1.xpose.msra.mxu0 0.0
    %1333 = vmatprep.subr.mxu0 0.0
    %1334 = vmatpush1.xpose.msra.mxu0 0.0
    %1335 = vmatprep.subr.mxu0 0.0
    %1336 = vmatpush1.xpose.msra.mxu0 0.0
    %1337 = vmatprep.subr.mxu0 0.0
    %1338 = vmatpush1.xpose.msra.mxu0 0.0
    %1339 = vmatprep.subr.mxu0 0.0
    %1340 = vmatpush1.xpose.msra.mxu0 0.0
    %1341 = vmatprep.subr.mxu0 0.0
    %1342 = vmatpush1.xpose.msra.mxu0 0.0
    %1343 = vmatprep.subr.mxu0 0.0
    %1344 = vmatpush1.xpose.msra.mxu0 0.0
    %1345 = vmatprep.subr.mxu0 0.0
    %1346 = vmatpush1.xpose.msra.mxu0 0.0
    %1347 = vmatprep.subr.mxu0 0.0
    %1348 = vmatpush1.xpose.msra.mxu0 0.0
    %1349 = vmatprep.subr.mxu0 0.0
    %1350 = vmatpush1.xpose.msra.mxu0 0.0
    %1351 = vmatprep.subr.mxu0 0.0
    %1352 = vmatpush1.xpose.msra.mxu0 0.0
    %1353 = vmatprep.subr.mxu0 0.0
    %1354 = vmatpush1.xpose.msra.mxu0 0.0
    %1355 = vmatprep.subr.mxu0 0.0
    %1356 = vmatpush1.xpose.msra.mxu0 0.0
    %1357 = vmatprep.subr.mxu0 0.0
    %1358 = vmatpush1.xpose.msra.mxu0 0.0
    %1359 = vmatprep.subr.mxu0 0.0
    %1360 = vmatpush1.xpose.msra.mxu0 0.0
    %1361 = vmatprep.subr.mxu0 0.0
    %1362 = vmatpush1.xpose.msra.mxu0 0.0
    %1363 = vmatprep.subr.mxu0 0.0
    %1364 = vmatpush1.xpose.msra.mxu0 0.0
    %1365 = vmatprep.subr.mxu0 0.0
    %1366 = vmatpush1.xpose.msra.mxu0 0.0
    %1367 = vmatprep.subr.mxu0 0.0
    %1368 = vmatpush1.xpose.msra.mxu0 0.0
    %1369 = vmatprep.subr.mxu0 0.0
    %1370 = vmatpush1.xpose.msra.mxu0 0.0
    %1371 = vmatprep.mubr.f32.mxu0 0.0
    %1372 = vmatmul.mubr.f32.gmra.mrb[0].mxu0 %v1286
    %v1373 = vpop.f32.mrb[0].mxu0
    %v1374 = vadd.f32 %v145, %v1373
    %v1375 = vpop.f32.mrb[0].mxu0
    %1376 = vmatprep.mubr.f32.mxu0 0.0
    %1377 = vmatmul.mubr.f32.gmra.mrb[0].mxu0 %v1289
    %v1378 = vpop.f32.mrb[0].mxu0
    %v1379 = vadd.f32 %v146, %v1378
    %v1380 = vpop.f32.mrb[0].mxu0
    %1381 = vdwg.mxu0
    %v1382 = vsel %vm499, %v1374, -inf
    %1383 = vmax.xlane.f32.xlu0 %v1382
    %v1384 = vpop.xlane.xlu0 %1383
    %v1385 = vsel %vm499, %v1379, -inf
    %1386 = vmax.xlane.f32.xlu0 %v1385
    %v1387 = vpop.xlane.xlu0 %1386
    %v1388 = vsub.f32 %v1374, %v1384
    %v1389 = vsub.f32 %v1379, %v1387
    %v1390 = vmul.f32 %v1388, 1.442695
    %v1391 = vpow.pop %v1390
    %v1392 = vmul.f32 %v1389, 1.442695
    %v1393 = vpow.pop %v1392
    %v1395 = vsel %vm499, %v1391, 0
    %v1398 = vsel %vm499, %v1393, 0
    %1400 = vmatprep.subr.mxu0 0.0
    %1401 = vmatpush1.msra.mxu0 %v147
    %1402 = vmatprep.subr.mxu0 0.0
    %1403 = vmatpush1.msra.mxu0 %v148
    %1404 = vmatprep.subr.mxu0 0.0
    %1405 = vmatpush1.msra.mxu0 %v149
    %1406 = vmatprep.subr.mxu0 0.0
    %1407 = vmatpush1.msra.mxu0 %v150
    %1408 = vmatprep.subr.mxu0 0.0
    %1409 = vmatpush1.msra.mxu0 %v151
    %1410 = vmatprep.subr.mxu0 0.0
    %1411 = vmatpush1.msra.mxu0 %v152
    %1412 = vmatprep.subr.mxu0 0.0
    %1413 = vmatpush1.msra.mxu0 %v153
    %1414 = vmatprep.subr.mxu0 0.0
    %1415 = vmatpush1.msra.mxu0 %v154
    %1416 = vmatprep.subr.mxu0 0.0
    %1417 = vmatpush1.msra.mxu0 0.0
    %1418 = vmatprep.subr.mxu0 0.0
    %1419 = vmatpush1.msra.mxu0 0.0
    %1420 = vmatprep.subr.mxu0 0.0
    %1421 = vmatpush1.msra.mxu0 0.0
    %1422 = vmatprep.subr.mxu0 0.0
    %1423 = vmatpush1.msra.mxu0 0.0
    %1424 = vmatprep.subr.mxu0 0.0
    %1425 = vmatpush1.msra.mxu0 0.0
    %1426 = vmatprep.subr.mxu0 0.0
    %1427 = vmatpush1.msra.mxu0 0.0
    %1428 = vmatprep.subr.mxu0 0.0
    %1429 = vmatpush1.msra.mxu0 0.0
    %1430 = vmatprep.subr.mxu0 0.0
    %1431 = vmatpush1.msra.mxu0 0.0
    %1432 = vmatprep.subr.mxu0 0.0
    %1433 = vmatpush1.msra.mxu0 0.0
    %1434 = vmatprep.subr.mxu0 0.0
    %1435 = vmatpush1.msra.mxu0 0.0
    %1436 = vmatprep.subr.mxu0 0.0
    %1437 = vmatpush1.msra.mxu0 0.0
    %1438 = vmatprep.subr.mxu0 0.0
    %1439 = vmatpush1.msra.mxu0 0.0
    %1440 = vmatprep.subr.mxu0 0.0
    %1441 = vmatpush1.msra.mxu0 0.0
    %1442 = vmatprep.subr.mxu0 0.0
    %1443 = vmatpush1.msra.mxu0 0.0
    %1444 = vmatprep.subr.mxu0 0.0
    %1445 = vmatpush1.msra.mxu0 0.0
    %1446 = vmatprep.subr.mxu0 0.0
    %1447 = vmatpush1.msra.mxu0 0.0
    %1448 = vmatprep.subr.mxu0 0.0
    %1449 = vmatpush1.msra.mxu0 0.0
    %1450 = vmatprep.subr.mxu0 0.0
    %1451 = vmatpush1.msra.mxu0 0.0
    %1452 = vmatprep.subr.mxu0 0.0
    %1453 = vmatpush1.msra.mxu0 0.0
    %1454 = vmatprep.subr.mxu0 0.0
    %1455 = vmatpush1.msra.mxu0 0.0
    %1456 = vmatprep.subr.mxu0 0.0
    %1457 = vmatpush1.msra.mxu0 0.0
    %1458 = vmatprep.subr.mxu0 0.0
    %1459 = vmatpush1.msra.mxu0 0.0
    %1460 = vmatprep.subr.mxu0 0.0
    %1461 = vmatpush1.msra.mxu0 0.0
    %1462 = vmatprep.subr.mxu0 0.0
    %1463 = vmatpush1.msra.mxu0 0.0
    %1464 = vmatprep.mubr.f32.mxu0 0.0
    %1465 = vmatmul.mubr.f32.gmra.mrb[0].mxu0 %v1395
    %v1466 = vpop.f32.mrb[0].mxu0
    %v1467 = vadd.f32 0.0, %v1466
    %v1468 = vpop.f32.mrb[0].mxu0
    %1469 = vmatprep.mubr.f32.mxu0 0.0
    %1470 = vmatmul.mubr.f32.gmra.mrb[0].mxu0 %v1398
    %v1471 = vpop.f32.mrb[0].mxu0
    %v1472 = vadd.f32 0.0, %v1471
    %v1473 = vpop.f32.mrb[0].mxu0
    %1474 = vdwg.mxu0
    %1483 = vrot.lane.b32.xlu0 %v1253, 64
    %v1484 = vpop.permute.xlu0 %1483
    %1485 = vrot.lane.b32.xlu0 %v1254, 64
    %v1486 = vpop.permute.xlu0 %1485
    %1487 = vrot.lane.b32.xlu0 %v1255, 64
    %v1488 = vpop.permute.xlu0 %1487
    %1489 = vrot.lane.b32.xlu0 %v1256, 64
    %v1490 = vpop.permute.xlu0 %1489
    %1491 = vrot.lane.b32.xlu0 %v1257, 64
    %v1492 = vpop.permute.xlu0 %1491
    %1493 = vrot.lane.b32.xlu0 %v1258, 64
    %v1494 = vpop.permute.xlu0 %1493
    %1495 = vrot.lane.b32.xlu0 %v1259, 64
    %v1496 = vpop.permute.xlu0 %1495
    %1497 = vrot.lane.b32.xlu0 %v1260, 64
    %v1498 = vpop.permute.xlu0 %1497
    %1507 = vmatprep.subr.mxu0 0.0
    %1508 = vmatpush1.msra.mxu0 %v1484
    %1509 = vmatprep.subr.mxu0 0.0
    %1510 = vmatpush1.msra.mxu0 %v1486
    %1511 = vmatprep.subr.mxu0 0.0
    %1512 = vmatpush1.msra.mxu0 %v1488
    %1513 = vmatprep.subr.mxu0 0.0
    %1514 = vmatpush1.msra.mxu0 %v1490
    %1515 = vmatprep.subr.mxu0 0.0
    %1516 = vmatpush1.msra.mxu0 %v1492
    %1517 = vmatprep.subr.mxu0 0.0
    %1518 = vmatpush1.msra.mxu0 %v1494
    %1519 = vmatprep.subr.mxu0 0.0
    %1520 = vmatpush1.msra.mxu0 %v1496
    %1521 = vmatprep.subr.mxu0 0.0
    %1522 = vmatpush1.msra.mxu0 %v1498
    %1523 = vmatprep.subr.mxu0 0.0
    %1524 = vmatpush1.msra.mxu0 0.0
    %1525 = vmatprep.subr.mxu0 0.0
    %1526 = vmatpush1.msra.mxu0 0.0
    %1527 = vmatprep.subr.mxu0 0.0
    %1528 = vmatpush1.msra.mxu0 0.0
    %1529 = vmatprep.subr.mxu0 0.0
    %1530 = vmatpush1.msra.mxu0 0.0
    %1531 = vmatprep.subr.mxu0 0.0
    %1532 = vmatpush1.msra.mxu0 0.0
    %1533 = vmatprep.subr.mxu0 0.0
    %1534 = vmatpush1.msra.mxu0 0.0
    %1535 = vmatprep.subr.mxu0 0.0
    %1536 = vmatpush1.msra.mxu0 0.0
    %1537 = vmatprep.subr.mxu0 0.0
    %1538 = vmatpush1.msra.mxu0 0.0
    %1539 = vmatprep.subr.mxu0 0.0
    %1540 = vmatpush1.msra.mxu0 0.0
    %1541 = vmatprep.subr.mxu0 0.0
    %1542 = vmatpush1.msra.mxu0 0.0
    %1543 = vmatprep.subr.mxu0 0.0
    %1544 = vmatpush1.msra.mxu0 0.0
    %1545 = vmatprep.subr.mxu0 0.0
    %1546 = vmatpush1.msra.mxu0 0.0
    %1547 = vmatprep.subr.mxu0 0.0
    %1548 = vmatpush1.msra.mxu0 0.0
    %1549 = vmatprep.subr.mxu0 0.0
    %1550 = vmatpush1.msra.mxu0 0.0
    %1551 = vmatprep.subr.mxu0 0.0
    %1552 = vmatpush1.msra.mxu0 0.0
    %1553 = vmatprep.subr.mxu0 0.0
    %1554 = vmatpush1.msra.mxu0 0.0
    %1555 = vmatprep.subr.mxu0 0.0
    %1556 = vmatpush1.msra.mxu0 0.0
    %1557 = vmatprep.subr.mxu0 0.0
    %1558 = vmatpush1.msra.mxu0 0.0
    %1559 = vmatprep.subr.mxu0 0.0
    %1560 = vmatpush1.msra.mxu0 0.0
    %1561 = vmatprep.subr.mxu0 0.0
    %1562 = vmatpush1.msra.mxu0 0.0
    %1563 = vmatprep.subr.mxu0 0.0
    %1564 = vmatpush1.msra.mxu0 0.0
    %1565 = vmatprep.subr.mxu0 0.0
    %1566 = vmatpush1.msra.mxu0 0.0
    %1567 = vmatprep.subr.mxu0 0.0
    %1568 = vmatpush1.msra.mxu0 0.0
    %1569 = vmatprep.subr.mxu0 0.0
    %1570 = vmatpush1.msra.mxu0 0.0
    %1571 = vmatprep.mubr.f32.mxu0 0.0
    %1572 = vmatmul.mubr.f32.gmra.mrb[0].mxu0 %v1395
    %v1573 = vpop.f32.mrb[0].mxu0
    %v1574 = vadd.f32 0.0, %v1573
    %v1575 = vpop.f32.mrb[0].mxu0
    %1576 = vmatprep.mubr.f32.mxu0 0.0
    %1577 = vmatmul.mubr.f32.gmra.mrb[0].mxu0 %v1398
    %v1578 = vpop.f32.mrb[0].mxu0
    %v1579 = vadd.f32 0.0, %v1578
    %v1580 = vpop.f32.mrb[0].mxu0
    %1581 = vdwg.mxu0
    %v1582 = vrcp.pop %v1467
    %v1583 = vrcp.pop %v1472
    %v1584 = vmul.f32 %v1574, %v1582
    %v1585 = vmul.f32 %v1579, %v1583
    %v1586 = vlaneseq
    %v1587 = vshrl.u32 %v1586, 7
    %v1588 = vsub.s32 1, %v1587
    %v1589 = vrot.slane %v1123, %v1588
    %v1591 = vsel %vm188, %v1584, 0
    %v1594 = vsel %vm188, %v1585, 0
    %v1597 = vsel %vm188, %v1104, 0
    %v1600 = vsel %vm188, %v1105, 0
    %v1603 = vsel %vm188, %v1106, 0
    %v1606 = vsel %vm188, %v1107, 0
    %1608 = vmatprep.subr.mxu0 0.0
    %1609 = vmatpush1.xpose.msra.mxu0 %v1597
    %1610 = vmatprep.subr.mxu0 0.0
    %1611 = vmatpush1.xpose.msra.mxu0 %v1600
    %1612 = vmatprep.subr.mxu0 0.0
    %1613 = vmatpush1.xpose.msra.mxu0 %v1603
    %1614 = vmatprep.subr.mxu0 0.0
    %1615 = vmatpush1.xpose.msra.mxu0 %v1606
    %1616 = vmatprep.subr.mxu0 0.0
    %1617 = vmatpush1.xpose.msra.mxu0 0.0
    %1618 = vmatprep.subr.mxu0 0.0
    %1619 = vmatpush1.xpose.msra.mxu0 0.0
    %1620 = vmatprep.subr.mxu0 0.0
    %1621 = vmatpush1.xpose.msra.mxu0 0.0
    %1622 = vmatprep.subr.mxu0 0.0
    %1623 = vmatpush1.xpose.msra.mxu0 0.0
    %1624 = vmatprep.subr.mxu0 0.0
    %1625 = vmatpush1.xpose.msra.mxu0 0.0
    %1626 = vmatprep.subr.mxu0 0.0
    %1627 = vmatpush1.xpose.msra.mxu0 0.0
    %1628 = vmatprep.subr.mxu0 0.0
    %1629 = vmatpush1.xpose.msra.mxu0 0.0
    %1630 = vmatprep.subr.mxu0 0.0
    %1631 = vmatpush1.xpose.msra.mxu0 0.0
    %1632 = vmatprep.subr.mxu0 0.0
    %1633 = vmatpush1.xpose.msra.mxu0 0.0
    %1634 = vmatprep.subr.mxu0 0.0
    %1635 = vmatpush1.xpose.msra.mxu0 0.0
    %1636 = vmatprep.subr.mxu0 0.0
    %1637 = vmatpush1.xpose.msra.mxu0 0.0
    %1638 = vmatprep.subr.mxu0 0.0
    %1639 = vmatpush1.xpose.msra.mxu0 0.0
    %1640 = vmatprep.subr.mxu0 0.0
    %1641 = vmatpush1.xpose.msra.mxu0 0.0
    %1642 = vmatprep.subr.mxu0 0.0
    %1643 = vmatpush1.xpose.msra.mxu0 0.0
    %1644 = vmatprep.subr.mxu0 0.0
    %1645 = vmatpush1.xpose.msra.mxu0 0.0
    %1646 = vmatprep.subr.mxu0 0.0
    %1647 = vmatpush1.xpose.msra.mxu0 0.0
    %1648 = vmatprep.subr.mxu0 0.0
    %1649 = vmatpush1.xpose.msra.mxu0 0.0
    %1650 = vmatprep.subr.mxu0 0.0
    %1651 = vmatpush1.xpose.msra.mxu0 0.0
    %1652 = vmatprep.subr.mxu0 0.0
    %1653 = vmatpush1.xpose.msra.mxu0 0.0
    %1654 = vmatprep.subr.mxu0 0.0
    %1655 = vmatpush1.xpose.msra.mxu0 0.0
    %1656 = vmatprep.subr.mxu0 0.0
    %1657 = vmatpush1.xpose.msra.mxu0 0.0
    %1658 = vmatprep.subr.mxu0 0.0
    %1659 = vmatpush1.xpose.msra.mxu0 0.0
    %1660 = vmatprep.subr.mxu0 0.0
    %1661 = vmatpush1.xpose.msra.mxu0 0.0
    %1662 = vmatprep.subr.mxu0 0.0
    %1663 = vmatpush1.xpose.msra.mxu0 0.0
    %1664 = vmatprep.subr.mxu0 0.0
    %1665 = vmatpush1.xpose.msra.mxu0 0.0
    %1666 = vmatprep.subr.mxu0 0.0
    %1667 = vmatpush1.xpose.msra.mxu0 0.0
    %1668 = vmatprep.subr.mxu0 0.0
    %1669 = vmatpush1.xpose.msra.mxu0 0.0
    %1670 = vmatprep.subr.mxu0 0.0
    %1671 = vmatpush1.xpose.msra.mxu0 0.0
    %1672 = vmatprep.mubr.f32.mxu0 0.0
    %1673 = vmatmul.mubr.f32.gmra.mrb[0].mxu0 %v1591
    %v1674 = vpop.f32.mrb[0].mxu0
    %v1675 = vadd.f32 %v1589, %v1674
    %v1676 = vpop.f32.mrb[0].mxu0
    %1677 = vmatprep.mubr.f32.mxu0 0.0
    %1678 = vmatmul.mubr.f32.gmra.mrb[0].mxu0 %v1594
    %v1679 = vpop.f32.mrb[0].mxu0
    %v1680 = vadd.f32 %v1589, %v1679
    %v1681 = vpop.f32.mrb[0].mxu0
    %1682 = vdwg.mxu0
    %v1683 = vadd.f32 %v1088, %v1675
    %v1684 = vadd.f32 %v1089, %v1680
    %v1685 = vsel %vm188, %v1683, 0.0
    %1686 = vadd.xlane.f32.xlu0 %v1685
    %v1687 = vpop.xlane.xlu0 %1686
    %v1688 = vsel %vm188, %v1684, 0.0
    %1689 = vadd.xlane.f32.xlu0 %v1688
    %v1690 = vpop.xlane.xlu0 %1689
    %v1691 = vmul.f32 %v1687, %v809
    %v1692 = vmul.f32 %v1690, %v809
    %v1693 = vsub.f32 %v1683, %v1691
    %v1694 = vsub.f32 %v1684, %v1692
    %v1695 = vmul.f32 %v1693, %v1693
    %v1696 = vmul.f32 %v1694, %v1694
    %v1697 = vsel %vm188, %v1695, 0.0
    %1698 = vadd.xlane.f32.xlu0 %v1697
    %v1699 = vpop.xlane.xlu0 %1698
    %v1700 = vsel %vm188, %v1696, 0.0
    %1701 = vadd.xlane.f32.xlu0 %v1700
    %v1702 = vpop.xlane.xlu0 %1701
    %v1703 = vmul.f32 %v1699, %v809
    %v1704 = vmul.f32 %v1702, %v809
    %v1705 = vadd.f32 %v1703, 1e-05
    %v1706 = vadd.f32 %v1704, 1e-05
    %v1707 = vrsqrt.pop %v1705
    %v1708 = vrsqrt.pop %v1706
    %v1709 = vmul.f32 %v1693, %v1707
    %v1710 = vmul.f32 %v1694, %v1708
    %v1711 = vlaneseq
    %v1712 = vshrl.u32 %v1711, 7
    %v1713 = vsub.s32 2, %v1712
    %v1714 = vrot.slane %v1123, %v1713
    %v1715 = vmul.f32 %v1709, %v1714
    %v1716 = vmul.f32 %v1710, %v1714
    %v1717 = vlaneseq
    %v1718 = vshrl.u32 %v1717, 7
    %v1719 = vsub.s32 3, %v1718
    %v1720 = vrot.slane %v1123, %v1719
    %v1721 = vadd.f32 %v1715, %v1720
    %v1722 = vadd.f32 %v1716, %v1720
    %v1723 = vlaneseq
    %v1724 = vshrl.u32 %v1723, 7
    %v1725 = vsub.s32 4, %v1724
    %v1726 = vrot.slane %v1123, %v1725
    %v1728 = vsel %vm188, %v1721, 0
    %v1731 = vsel %vm188, %v1722, 0
    %v1734 = vsel %vm188, %v1109, 0
    %v1737 = vsel %vm188, %v1110, 0
    %v1740 = vsel %vm188, %v1111, 0
    %v1743 = vsel %vm188, %v1112, 0
    %v1746 = vsel %vm188, %v1113, 0
    %v1749 = vsel %vm188, %v1114, 0
    %v1752 = vsel %vm188, %v1115, 0
    %v1755 = vsel %vm188, %v1116, 0
    %1757 = vmatprep.subr.mxu0 0.0
    %1758 = vmatpush1.xpose.msra.mxu0 %v1734
    %1759 = vmatprep.subr.mxu0 0.0
    %1760 = vmatpush1.xpose.msra.mxu0 %v1737
    %1761 = vmatprep.subr.mxu0 0.0
    %1762 = vmatpush1.xpose.msra.mxu0 %v1740
    %1763 = vmatprep.subr.mxu0 0.0
    %1764 = vmatpush1.xpose.msra.mxu0 %v1743
    %1765 = vmatprep.subr.mxu0 0.0
    %1766 = vmatpush1.xpose.msra.mxu0 %v1746
    %1767 = vmatprep.subr.mxu0 0.0
    %1768 = vmatpush1.xpose.msra.mxu0 %v1749
    %1769 = vmatprep.subr.mxu0 0.0
    %1770 = vmatpush1.xpose.msra.mxu0 %v1752
    %1771 = vmatprep.subr.mxu0 0.0
    %1772 = vmatpush1.xpose.msra.mxu0 %v1755
    %1773 = vmatprep.subr.mxu0 0.0
    %1774 = vmatpush1.xpose.msra.mxu0 0.0
    %1775 = vmatprep.subr.mxu0 0.0
    %1776 = vmatpush1.xpose.msra.mxu0 0.0
    %1777 = vmatprep.subr.mxu0 0.0
    %1778 = vmatpush1.xpose.msra.mxu0 0.0
    %1779 = vmatprep.subr.mxu0 0.0
    %1780 = vmatpush1.xpose.msra.mxu0 0.0
    %1781 = vmatprep.subr.mxu0 0.0
    %1782 = vmatpush1.xpose.msra.mxu0 0.0
    %1783 = vmatprep.subr.mxu0 0.0
    %1784 = vmatpush1.xpose.msra.mxu0 0.0
    %1785 = vmatprep.subr.mxu0 0.0
    %1786 = vmatpush1.xpose.msra.mxu0 0.0
    %1787 = vmatprep.subr.mxu0 0.0
    %1788 = vmatpush1.xpose.msra.mxu0 0.0
    %1789 = vmatprep.subr.mxu0 0.0
    %1790 = vmatpush1.xpose.msra.mxu0 0.0
    %1791 = vmatprep.subr.mxu0 0.0
    %1792 = vmatpush1.xpose.msra.mxu0 0.0
    %1793 = vmatprep.subr.mxu0 0.0
    %1794 = vmatpush1.xpose.msra.mxu0 0.0
    %1795 = vmatprep.subr.mxu0 0.0
    %1796 = vmatpush1.xpose.msra.mxu0 0.0
    %1797 = vmatprep.subr.mxu0 0.0
    %1798 = vmatpush1.xpose.msra.mxu0 0.0
    %1799 = vmatprep.subr.mxu0 0.0
    %1800 = vmatpush1.xpose.msra.mxu0 0.0
    %1801 = vmatprep.subr.mxu0 0.0
    %1802 = vmatpush1.xpose.msra.mxu0 0.0
    %1803 = vmatprep.subr.mxu0 0.0
    %1804 = vmatpush1.xpose.msra.mxu0 0.0
    %1805 = vmatprep.subr.mxu0 0.0
    %1806 = vmatpush1.xpose.msra.mxu0 0.0
    %1807 = vmatprep.subr.mxu0 0.0
    %1808 = vmatpush1.xpose.msra.mxu0 0.0
    %1809 = vmatprep.subr.mxu0 0.0
    %1810 = vmatpush1.xpose.msra.mxu0 0.0
    %1811 = vmatprep.subr.mxu0 0.0
    %1812 = vmatpush1.xpose.msra.mxu0 0.0
    %1813 = vmatprep.subr.mxu0 0.0
    %1814 = vmatpush1.xpose.msra.mxu0 0.0
    %1815 = vmatprep.subr.mxu0 0.0
    %1816 = vmatpush1.xpose.msra.mxu0 0.0
    %1817 = vmatprep.subr.mxu0 0.0
    %1818 = vmatpush1.xpose.msra.mxu0 0.0
    %1819 = vmatprep.subr.mxu0 0.0
    %1820 = vmatpush1.xpose.msra.mxu0 0.0
    %1821 = vmatprep.mubr.f32.mxu0 0.0
    %1822 = vmatmul.mubr.f32.gmra.mrb[0].mxu0 %v1728
    %v1823 = vpop.f32.mrb[0].mxu0
    %v1824 = vadd.f32 %v1726, %v1823
    %v1825 = vpop.f32.mrb[0].mxu0
    %1826 = vmatprep.mubr.f32.mxu0 0.0
    %1827 = vmatmul.mubr.f32.gmra.mrb[0].mxu0 %v1731
    %v1828 = vpop.f32.mrb[0].mxu0
    %v1829 = vadd.f32 %v1726, %v1828
    %v1830 = vpop.f32.mrb[0].mxu0
    %1831 = vdwg.mxu0
    %v1832 = vmax.f32 %v1824, 0.0
    %v1833 = vmax.f32 %v1829, 0.0
    %v1834 = vlaneseq
    %v1835 = vshrl.u32 %v1834, 7
    %v1836 = vsub.s32 5, %v1835
    %v1837 = vrot.slane %v1123, %v1836
    %v1839 = vsel %vm499, %v1832, 0
    %v1842 = vsel %vm499, %v1833, 0
    %v1845 = vsel %vm499, %v1118, 0
    %v1848 = vsel %vm499, %v1119, 0
    %v1851 = vsel %vm499, %v1120, 0
    %v1854 = vsel %vm499, %v1121, 0
    %1856 = vmatprep.subr.mxu0 0.0
    %1857 = vmatpush1.xpose.msra.mxu0 %v1845
    %1858 = vmatprep.subr.mxu0 0.0
    %1859 = vmatpush1.xpose.msra.mxu0 %v1848
    %1860 = vmatprep.subr.mxu0 0.0
    %1861 = vmatpush1.xpose.msra.mxu0 %v1851
    %1862 = vmatprep.subr.mxu0 0.0
    %1863 = vmatpush1.xpose.msra.mxu0 %v1854
    %1864 = vmatprep.subr.mxu0 0.0
    %1865 = vmatpush1.xpose.msra.mxu0 0.0
    %1866 = vmatprep.subr.mxu0 0.0
    %1867 = vmatpush1.xpose.msra.mxu0 0.0
    %1868 = vmatprep.subr.mxu0 0.0
    %1869 = vmatpush1.xpose.msra.mxu0 0.0
    %1870 = vmatprep.subr.mxu0 0.0
    %1871 = vmatpush1.xpose.msra.mxu0 0.0
    %1872 = vmatprep.subr.mxu0 0.0
    %1873 = vmatpush1.xpose.msra.mxu0 0.0
    %1874 = vmatprep.subr.mxu0 0.0
    %1875 = vmatpush1.xpose.msra.mxu0 0.0
    %1876 = vmatprep.subr.mxu0 0.0
    %1877 = vmatpush1.xpose.msra.mxu0 0.0
    %1878 = vmatprep.subr.mxu0 0.0
    %1879 = vmatpush1.xpose.msra.mxu0 0.0
    %1880 = vmatprep.subr.mxu0 0.0
    %1881 = vmatpush1.xpose.msra.mxu0 0.0
    %1882 = vmatprep.subr.mxu0 0.0
    %1883 = vmatpush1.xpose.msra.mxu0 0.0
    %1884 = vmatprep.subr.mxu0 0.0
    %1885 = vmatpush1.xpose.msra.mxu0 0.0
    %1886 = vmatprep.subr.mxu0 0.0
    %1887 = vmatpush1.xpose.msra.mxu0 0.0
    %1888 = vmatprep.subr.mxu0 0.0
    %1889 = vmatpush1.xpose.msra.mxu0 0.0
    %1890 = vmatprep.subr.mxu0 0.0
    %1891 = vmatpush1.xpose.msra.mxu0 0.0
    %1892 = vmatprep.subr.mxu0 0.0
    %1893 = vmatpush1.xpose.msra.mxu0 0.0
    %1894 = vmatprep.subr.mxu0 0.0
    %1895 = vmatpush1.xpose.msra.mxu0 0.0
    %1896 = vmatprep.subr.mxu0 0.0
    %1897 = vmatpush1.xpose.msra.mxu0 0.0
    %1898 = vmatprep.subr.mxu0 0.0
    %1899 = vmatpush1.xpose.msra.mxu0 0.0
    %1900 = vmatprep.subr.mxu0 0.0
    %1901 = vmatpush1.xpose.msra.mxu0 0.0
    %1902 = vmatprep.subr.mxu0 0.0
    %1903 = vmatpush1.xpose.msra.mxu0 0.0
    %1904 = vmatprep.subr.mxu0 0.0
    %1905 = vmatpush1.xpose.msra.mxu0 0.0
    %1906 = vmatprep.subr.mxu0 0.0
    %1907 = vmatpush1.xpose.msra.mxu0 0.0
    %1908 = vmatprep.subr.mxu0 0.0
    %1909 = vmatpush1.xpose.msra.mxu0 0.0
    %1910 = vmatprep.subr.mxu0 0.0
    %1911 = vmatpush1.xpose.msra.mxu0 0.0
    %1912 = vmatprep.subr.mxu0 0.0
    %1913 = vmatpush1.xpose.msra.mxu0 0.0
    %1914 = vmatprep.subr.mxu0 0.0
    %1915 = vmatpush1.xpose.msra.mxu0 0.0
    %1916 = vmatprep.subr.mxu0 0.0
    %1917 = vmatpush1.xpose.msra.mxu0 0.0
    %1918 = vmatprep.subr.mxu0 0.0
    %1919 = vmatpush1.xpose.msra.mxu0 0.0
    %1920 = vmatprep.mubr.f32.mxu0 0.0
    %1921 = vmatmul.mubr.f32.gmra.mrb[0].mxu0 %v1839
    %v1922 = vpop.f32.mrb[0].mxu0
    %v1923 = vadd.f32 %v1837, %v1922
    %v1924 = vpop.f32.mrb[0].mxu0
    %1925 = vmatprep.mubr.f32.mxu0 0.0
    %1926 = vmatmul.mubr.f32.gmra.mrb[0].mxu0 %v1842
    %v1927 = vpop.f32.mrb[0].mxu0
    %v1928 = vadd.f32 %v1837, %v1927
    %v1929 = vpop.f32.mrb[0].mxu0
    %1930 = vdwg.mxu0
    %v1931 = vadd.f32 %v1721, %v1923
    %v1932 = vadd.f32 %v1722, %v1928
    %v1933 = vsel %vm188, %v1931, 0.0
    %1934 = vadd.xlane.f32.xlu0 %v1933
    %v1935 = vpop.xlane.xlu0 %1934
    %v1936 = vsel %vm188, %v1932, 0.0
    %1937 = vadd.xlane.f32.xlu0 %v1936
    %v1938 = vpop.xlane.xlu0 %1937
    %v1939 = vmul.f32 %v1935, %v809
    %v1940 = vmul.f32 %v1938, %v809
    %v1941 = vsub.f32 %v1931, %v1939
    %v1942 = vsub.f32 %v1932, %v1940
    %v1943 = vmul.f32 %v1941, %v1941
    %v1944 = vmul.f32 %v1942, %v1942
    %v1945 = vsel %vm188, %v1943, 0.0
    %1946 = vadd.xlane.f32.xlu0 %v1945
    %v1947 = vpop.xlane.xlu0 %1946
    %v1948 = vsel %vm188, %v1944, 0.0
    %1949 = vadd.xlane.f32.xlu0 %v1948
    %v1950 = vpop.xlane.xlu0 %1949
    %v1951 = vmul.f32 %v1947, %v809
    %v1952 = vmul.f32 %v1950, %v809
    %v1953 = vadd.f32 %v1951, 1e-05
    %v1954 = vadd.f32 %v1952, 1e-05
    %v1955 = vrsqrt.pop %v1953
    %v1956 = vrsqrt.pop %v1954
    %v1957 = vmul.f32 %v1941, %v1955
    %v1958 = vmul.f32 %v1942, %v1956
    %v1959 = vlaneseq
    %v1960 = vshrl.u32 %v1959, 7
    %v1961 = vsub.s32 6, %v1960
    %v1962 = vrot.slane %v1123, %v1961
    %v1963 = vmul.f32 %v1957, %v1962
    %v1964 = vmul.f32 %v1958, %v1962
    %v1965 = vlaneseq
    %v1966 = vshrl.u32 %v1965, 7
    %v1967 = vsub.s32 7, %v1966
    %v1968 = vrot.slane %v1123, %v1967
    %v1969 = vadd.f32 %v1963, %v1968
    %v1970 = vadd.f32 %v1964, %v1968
    %v1971 = vsel %vm188, %v1969, -inf
    %v1972 = vrot.slane %v1971, 4
    %v1973 = vmax.f32 %v1971, %v1972
    %v1974 = vrot.slane %v1973, 2
    %v1975 = vmax.f32 %v1973, %v1974
    %v1976 = vrot.slane %v1975, 1
    %v1977 = vmax.f32 %v1975, %v1976
    %v1978 = vsel %vm188, %v1970, -inf
    %v1979 = vrot.slane %v1978, 4
    %v1980 = vmax.f32 %v1978, %v1979
    %v1981 = vrot.slane %v1980, 2
    %v1982 = vmax.f32 %v1980, %v1981
    %v1983 = vrot.slane %v1982, 1
    %v1984 = vmax.f32 %v1982, %v1983
    %v1985 = vsel %vm188, %v1969, inf
    %v1986 = vrot.slane %v1985, 4
    %v1987 = vmin.f32 %v1985, %v1986
    %v1988 = vrot.slane %v1987, 2
    %v1989 = vmin.f32 %v1987, %v1988
    %v1990 = vrot.slane %v1989, 1
    %v1991 = vmin.f32 %v1989, %v1990
    %v1992 = vsel %vm188, %v1970, inf
    %v1993 = vrot.slane %v1992, 4
    %v1994 = vmin.f32 %v1992, %v1993
    %v1995 = vrot.slane %v1994, 2
    %v1996 = vmin.f32 %v1994, %v1995
    %v1997 = vrot.slane %v1996, 1
    %v1998 = vmin.f32 %v1996, %v1997
    %v1999 = vsel %vm188, %v1969, 0.0
    %v2000 = vrot.slane %v1999, 4
    %v2001 = vadd.f32 %v1999, %v2000
    %v2002 = vrot.slane %v2001, 2
    %v2003 = vadd.f32 %v2001, %v2002
    %v2004 = vrot.slane %v2003, 1
    %v2005 = vadd.f32 %v2003, %v2004
    %v2006 = vsel %vm188, %v1970, 0.0
    %v2007 = vrot.slane %v2006, 4
    %v2008 = vadd.f32 %v2006, %v2007
    %v2009 = vrot.slane %v2008, 2
    %v2010 = vadd.f32 %v2008, %v2009
    %v2011 = vrot.slane %v2010, 1
    %v2012 = vadd.f32 %v2010, %v2011
    %v2013 = vrcp.pop 8.0
    %v2014 = vmul.f32 %v2005, %v2013
    %v2015 = vmul.f32 %v2012, %v2013
    %v2016 = vld [vmem:[%s10] sm:$0xff]
    %v2017 = vld [vmem:[%s10 + $0x8] sm:$0xff]
    %v2018 = vld [vmem:[%s10 + $0x10] sm:$0xff]
    %v2019 = vld [vmem:[%s10 + $0x18] sm:$0xff]
    %s2020 = scalar_lea.vmem %s10, 32
    %v2021 = vld [vmem:[%s2020] sm:$0xff]
    %v2022 = vld [vmem:[%s2020 + $0x8] sm:$0xff]
    %v2023 = vld [vmem:[%s2020 + $0x10] sm:$0xff]
    %v2024 = vld [vmem:[%s2020 + $0x18] sm:$0xff]
    %vm2027 = vcmask 1041409
    %v2028 = vsel %vm2027, %v1998, %v1991
    %v2029 = vsel %vm188, %v2028, 0
    %v2032 = vsel %vm188, %v2021, 0
    %v2035 = vsel %vm188, %v2022, 0
    %v2038 = vsel %vm188, %v2023, 0
    %v2041 = vsel %vm188, %v2024, 0
    %2043 = vmatprep.subr.mxu0 0.0
    %2044 = vmatpush1.xpose.msra.mxu0 %v2032
    %2045 = vmatprep.subr.mxu0 0.0
    %2046 = vmatpush1.xpose.msra.mxu0 %v2035
    %2047 = vmatprep.subr.mxu0 0.0
    %2048 = vmatpush1.xpose.msra.mxu0 %v2038
    %2049 = vmatprep.subr.mxu0 0.0
    %2050 = vmatpush1.xpose.msra.mxu0 %v2041
    %2051 = vmatprep.subr.mxu0 0.0
    %2052 = vmatpush1.xpose.msra.mxu0 0.0
    %2053 = vmatprep.subr.mxu0 0.0
    %2054 = vmatpush1.xpose.msra.mxu0 0.0
    %2055 = vmatprep.subr.mxu0 0.0
    %2056 = vmatpush1.xpose.msra.mxu0 0.0
    %2057 = vmatprep.subr.mxu0 0.0
    %2058 = vmatpush1.xpose.msra.mxu0 0.0
    %2059 = vmatprep.subr.mxu0 0.0
    %2060 = vmatpush1.xpose.msra.mxu0 0.0
    %2061 = vmatprep.subr.mxu0 0.0
    %2062 = vmatpush1.xpose.msra.mxu0 0.0
    %2063 = vmatprep.subr.mxu0 0.0
    %2064 = vmatpush1.xpose.msra.mxu0 0.0
    %2065 = vmatprep.subr.mxu0 0.0
    %2066 = vmatpush1.xpose.msra.mxu0 0.0
    %2067 = vmatprep.subr.mxu0 0.0
    %2068 = vmatpush1.xpose.msra.mxu0 0.0
    %2069 = vmatprep.subr.mxu0 0.0
    %2070 = vmatpush1.xpose.msra.mxu0 0.0
    %2071 = vmatprep.subr.mxu0 0.0
    %2072 = vmatpush1.xpose.msra.mxu0 0.0
    %2073 = vmatprep.subr.mxu0 0.0
    %2074 = vmatpush1.xpose.msra.mxu0 0.0
    %2075 = vmatprep.subr.mxu0 0.0
    %2076 = vmatpush1.xpose.msra.mxu0 0.0
    %2077 = vmatprep.subr.mxu0 0.0
    %2078 = vmatpush1.xpose.msra.mxu0 0.0
    %2079 = vmatprep.subr.mxu0 0.0
    %2080 = vmatpush1.xpose.msra.mxu0 0.0
    %2081 = vmatprep.subr.mxu0 0.0
    %2082 = vmatpush1.xpose.msra.mxu0 0.0
    %2083 = vmatprep.subr.mxu0 0.0
    %2084 = vmatpush1.xpose.msra.mxu0 0.0
    %2085 = vmatprep.subr.mxu0 0.0
    %2086 = vmatpush1.xpose.msra.mxu0 0.0
    %2087 = vmatprep.subr.mxu0 0.0
    %2088 = vmatpush1.xpose.msra.mxu0 0.0
    %2089 = vmatprep.subr.mxu0 0.0
    %2090 = vmatpush1.xpose.msra.mxu0 0.0
    %2091 = vmatprep.subr.mxu0 0.0
    %2092 = vmatpush1.xpose.msra.mxu0 0.0
    %2093 = vmatprep.subr.mxu0 0.0
    %2094 = vmatpush1.xpose.msra.mxu0 0.0
    %2095 = vmatprep.subr.mxu0 0.0
    %2096 = vmatpush1.xpose.msra.mxu0 0.0
    %2097 = vmatprep.subr.mxu0 0.0
    %2098 = vmatpush1.xpose.msra.mxu0 0.0
    %2099 = vmatprep.subr.mxu0 0.0
    %2100 = vmatpush1.xpose.msra.mxu0 0.0
    %2101 = vmatprep.subr.mxu0 0.0
    %2102 = vmatpush1.xpose.msra.mxu0 0.0
    %2103 = vmatprep.subr.mxu0 0.0
    %2104 = vmatpush1.xpose.msra.mxu0 0.0
    %2105 = vmatprep.subr.mxu0 0.0
    %2106 = vmatpush1.xpose.msra.mxu0 0.0
    %2107 = vmatprep.mubr.f32.mxu0 0.0
    %2108 = vmatmul.mubr.f32.gmra.mrb[0].mxu0 %v2029
    %v2109 = vpop.f32.mrb[0].mxu0
    %v2110 = vadd.f32 0.0, %v2109
    %v2111 = vpop.f32.mrb[0].mxu0
    %2112 = vdwg.mxu0
    %v2115 = vsel %vm2027, %v1984, %v1977
    %v2116 = vsel %vm188, %v2115, 0
    %v2119 = vsel %vm188, %v2016, 0
    %v2122 = vsel %vm188, %v2017, 0
    %v2125 = vsel %vm188, %v2018, 0
    %v2128 = vsel %vm188, %v2019, 0
    %2130 = vmatprep.subr.mxu0 0.0
    %2131 = vmatpush1.xpose.msra.mxu0 %v2119
    %2132 = vmatprep.subr.mxu0 0.0
    %2133 = vmatpush1.xpose.msra.mxu0 %v2122
    %2134 = vmatprep.subr.mxu0 0.0
    %2135 = vmatpush1.xpose.msra.mxu0 %v2125
    %2136 = vmatprep.subr.mxu0 0.0
    %2137 = vmatpush1.xpose.msra.mxu0 %v2128
    %2138 = vmatprep.subr.mxu0 0.0
    %2139 = vmatpush1.xpose.msra.mxu0 0.0
    %2140 = vmatprep.subr.mxu0 0.0
    %2141 = vmatpush1.xpose.msra.mxu0 0.0
    %2142 = vmatprep.subr.mxu0 0.0
    %2143 = vmatpush1.xpose.msra.mxu0 0.0
    %2144 = vmatprep.subr.mxu0 0.0
    %2145 = vmatpush1.xpose.msra.mxu0 0.0
    %2146 = vmatprep.subr.mxu0 0.0
    %2147 = vmatpush1.xpose.msra.mxu0 0.0
    %2148 = vmatprep.subr.mxu0 0.0
    %2149 = vmatpush1.xpose.msra.mxu0 0.0
    %2150 = vmatprep.subr.mxu0 0.0
    %2151 = vmatpush1.xpose.msra.mxu0 0.0
    %2152 = vmatprep.subr.mxu0 0.0
    %2153 = vmatpush1.xpose.msra.mxu0 0.0
    %2154 = vmatprep.subr.mxu0 0.0
    %2155 = vmatpush1.xpose.msra.mxu0 0.0
    %2156 = vmatprep.subr.mxu0 0.0
    %2157 = vmatpush1.xpose.msra.mxu0 0.0
    %2158 = vmatprep.subr.mxu0 0.0
    %2159 = vmatpush1.xpose.msra.mxu0 0.0
    %2160 = vmatprep.subr.mxu0 0.0
    %2161 = vmatpush1.xpose.msra.mxu0 0.0
    %2162 = vmatprep.subr.mxu0 0.0
    %2163 = vmatpush1.xpose.msra.mxu0 0.0
    %2164 = vmatprep.subr.mxu0 0.0
    %2165 = vmatpush1.xpose.msra.mxu0 0.0
    %2166 = vmatprep.subr.mxu0 0.0
    %2167 = vmatpush1.xpose.msra.mxu0 0.0
    %2168 = vmatprep.subr.mxu0 0.0
    %2169 = vmatpush1.xpose.msra.mxu0 0.0
    %2170 = vmatprep.subr.mxu0 0.0
    %2171 = vmatpush1.xpose.msra.mxu0 0.0
    %2172 = vmatprep.subr.mxu0 0.0
    %2173 = vmatpush1.xpose.msra.mxu0 0.0
    %2174 = vmatprep.subr.mxu0 0.0
    %2175 = vmatpush1.xpose.msra.mxu0 0.0
    %2176 = vmatprep.subr.mxu0 0.0
    %2177 = vmatpush1.xpose.msra.mxu0 0.0
    %2178 = vmatprep.subr.mxu0 0.0
    %2179 = vmatpush1.xpose.msra.mxu0 0.0
    %2180 = vmatprep.subr.mxu0 0.0
    %2181 = vmatpush1.xpose.msra.mxu0 0.0
    %2182 = vmatprep.subr.mxu0 0.0
    %2183 = vmatpush1.xpose.msra.mxu0 0.0
    %2184 = vmatprep.subr.mxu0 0.0
    %2185 = vmatpush1.xpose.msra.mxu0 0.0
    %2186 = vmatprep.subr.mxu0 0.0
    %2187 = vmatpush1.xpose.msra.mxu0 0.0
    %2188 = vmatprep.subr.mxu0 0.0
    %2189 = vmatpush1.xpose.msra.mxu0 0.0
    %2190 = vmatprep.subr.mxu0 0.0
    %2191 = vmatpush1.xpose.msra.mxu0 0.0
    %2192 = vmatprep.subr.mxu0 0.0
    %2193 = vmatpush1.xpose.msra.mxu0 0.0
    %2194 = vmatprep.mubr.f32.mxu0 0.0
    %2195 = vmatmul.mubr.f32.gmra.mrb[0].mxu0 %v2116
    %v2196 = vpop.f32.mrb[0].mxu0
    %v2197 = vadd.f32 %v2110, %v2196
    %v2198 = vpop.f32.mrb[0].mxu0
    %2199 = vdwg.mxu0
    %s2200 = scalar_lea.vmem %s10, 64
    %v2201 = vld [vmem:[%s2200] sm:$0xff]
    %v2202 = vld [vmem:[%s2200 + $0x8] sm:$0xff]
    %v2203 = vld [vmem:[%s2200 + $0x10] sm:$0xff]
    %v2204 = vld [vmem:[%s2200 + $0x18] sm:$0xff]
    %v2207 = vsel %vm2027, %v2015, %v2014
    %v2208 = vsel %vm188, %v2207, 0
    %v2211 = vsel %vm188, %v2201, 0
    %v2214 = vsel %vm188, %v2202, 0
    %v2217 = vsel %vm188, %v2203, 0
    %v2220 = vsel %vm188, %v2204, 0
    %2222 = vmatprep.subr.mxu0 0.0
    %2223 = vmatpush1.xpose.msra.mxu0 %v2211
    %2224 = vmatprep.subr.mxu0 0.0
    %2225 = vmatpush1.xpose.msra.mxu0 %v2214
    %2226 = vmatprep.subr.mxu0 0.0
    %2227 = vmatpush1.xpose.msra.mxu0 %v2217
    %2228 = vmatprep.subr.mxu0 0.0
    %2229 = vmatpush1.xpose.msra.mxu0 %v2220
    %2230 = vmatprep.subr.mxu0 0.0
    %2231 = vmatpush1.xpose.msra.mxu0 0.0
    %2232 = vmatprep.subr.mxu0 0.0
    %2233 = vmatpush1.xpose.msra.mxu0 0.0
    %2234 = vmatprep.subr.mxu0 0.0
    %2235 = vmatpush1.xpose.msra.mxu0 0.0
    %2236 = vmatprep.subr.mxu0 0.0
    %2237 = vmatpush1.xpose.msra.mxu0 0.0
    %2238 = vmatprep.subr.mxu0 0.0
    %2239 = vmatpush1.xpose.msra.mxu0 0.0
    %2240 = vmatprep.subr.mxu0 0.0
    %2241 = vmatpush1.xpose.msra.mxu0 0.0
    %2242 = vmatprep.subr.mxu0 0.0
    %2243 = vmatpush1.xpose.msra.mxu0 0.0
    %2244 = vmatprep.subr.mxu0 0.0
    %2245 = vmatpush1.xpose.msra.mxu0 0.0
    %2246 = vmatprep.subr.mxu0 0.0
    %2247 = vmatpush1.xpose.msra.mxu0 0.0
    %2248 = vmatprep.subr.mxu0 0.0
    %2249 = vmatpush1.xpose.msra.mxu0 0.0
    %2250 = vmatprep.subr.mxu0 0.0
    %2251 = vmatpush1.xpose.msra.mxu0 0.0
    %2252 = vmatprep.subr.mxu0 0.0
    %2253 = vmatpush1.xpose.msra.mxu0 0.0
    %2254 = vmatprep.subr.mxu0 0.0
    %2255 = vmatpush1.xpose.msra.mxu0 0.0
    %2256 = vmatprep.subr.mxu0 0.0
    %2257 = vmatpush1.xpose.msra.mxu0 0.0
    %2258 = vmatprep.subr.mxu0 0.0
    %2259 = vmatpush1.xpose.msra.mxu0 0.0
    %2260 = vmatprep.subr.mxu0 0.0
    %2261 = vmatpush1.xpose.msra.mxu0 0.0
    %2262 = vmatprep.subr.mxu0 0.0
    %2263 = vmatpush1.xpose.msra.mxu0 0.0
    %2264 = vmatprep.subr.mxu0 0.0
    %2265 = vmatpush1.xpose.msra.mxu0 0.0
    %2266 = vmatprep.subr.mxu0 0.0
    %2267 = vmatpush1.xpose.msra.mxu0 0.0
    %2268 = vmatprep.subr.mxu0 0.0
    %2269 = vmatpush1.xpose.msra.mxu0 0.0
    %2270 = vmatprep.subr.mxu0 0.0
    %2271 = vmatpush1.xpose.msra.mxu0 0.0
    %2272 = vmatprep.subr.mxu0 0.0
    %2273 = vmatpush1.xpose.msra.mxu0 0.0
    %2274 = vmatprep.subr.mxu0 0.0
    %2275 = vmatpush1.xpose.msra.mxu0 0.0
    %2276 = vmatprep.subr.mxu0 0.0
    %2277 = vmatpush1.xpose.msra.mxu0 0.0
    %2278 = vmatprep.subr.mxu0 0.0
    %2279 = vmatpush1.xpose.msra.mxu0 0.0
    %2280 = vmatprep.subr.mxu0 0.0
    %2281 = vmatpush1.xpose.msra.mxu0 0.0
    %2282 = vmatprep.subr.mxu0 0.0
    %2283 = vmatpush1.xpose.msra.mxu0 0.0
    %2284 = vmatprep.subr.mxu0 0.0
    %2285 = vmatpush1.xpose.msra.mxu0 0.0
    %2286 = vmatprep.mubr.f32.mxu0 0.0
    %2287 = vmatmul.mubr.f32.gmra.mrb[0].mxu0 %v2208
    %v2288 = vpop.f32.mrb[0].mxu0
    %v2289 = vadd.f32 0.0, %v2288
    %v2290 = vpop.f32.mrb[0].mxu0
    %2291 = vdwg.mxu0
    %v2292 = vadd.f32 %v2197, %v2289
    %v2293 = vld [vmem:[%s11] sm:$0x1]
    %v2295 = vlaneseq
    %v2296 = vshrl.u32 %v2295, 7
    %v2297 = vsub.s32 0, %v2296
    %v2298 = vrot.slane %v2293, %v2297
    %v2300 = vadd.f32 %v2292, %v2298
    %v2301 = vmax.f32 %v2300, 0.0
    %v2302 = vld [vmem:[%s12] sm:$0x7]
    %v2303 = vld [vmem:[%s13] sm:$0x1]
    %v2305 = vlaneseq
    %v2306 = vshrl.u32 %v2305, 7
    %v2307 = vsub.s32 0, %v2306
    %v2308 = vrot.slane %v2303, %v2307
    %v2311 = vsel %vm188, %v2301, 0
    %v2314 = vsel %vm188, %v2302, 0
    %2316 = vmatprep.subr.mxu0 0.0
    %2317 = vmatpush1.xpose.msra.mxu0 %v2314
    %2318 = vmatprep.subr.mxu0 0.0
    %2319 = vmatpush1.xpose.msra.mxu0 0.0
    %2320 = vmatprep.subr.mxu0 0.0
    %2321 = vmatpush1.xpose.msra.mxu0 0.0
    %2322 = vmatprep.subr.mxu0 0.0
    %2323 = vmatpush1.xpose.msra.mxu0 0.0
    %2324 = vmatprep.subr.mxu0 0.0
    %2325 = vmatpush1.xpose.msra.mxu0 0.0
    %2326 = vmatprep.subr.mxu0 0.0
    %2327 = vmatpush1.xpose.msra.mxu0 0.0
    %2328 = vmatprep.subr.mxu0 0.0
    %2329 = vmatpush1.xpose.msra.mxu0 0.0
    %2330 = vmatprep.subr.mxu0 0.0
    %2331 = vmatpush1.xpose.msra.mxu0 0.0
    %2332 = vmatprep.subr.mxu0 0.0
    %2333 = vmatpush1.xpose.msra.mxu0 0.0
    %2334 = vmatprep.subr.mxu0 0.0
    %2335 = vmatpush1.xpose.msra.mxu0 0.0
    %2336 = vmatprep.subr.mxu0 0.0
    %2337 = vmatpush1.xpose.msra.mxu0 0.0
    %2338 = vmatprep.subr.mxu0 0.0
    %2339 = vmatpush1.xpose.msra.mxu0 0.0
    %2340 = vmatprep.subr.mxu0 0.0
    %2341 = vmatpush1.xpose.msra.mxu0 0.0
    %2342 = vmatprep.subr.mxu0 0.0
    %2343 = vmatpush1.xpose.msra.mxu0 0.0
    %2344 = vmatprep.subr.mxu0 0.0
    %2345 = vmatpush1.xpose.msra.mxu0 0.0
    %2346 = vmatprep.subr.mxu0 0.0
    %2347 = vmatpush1.xpose.msra.mxu0 0.0
    %2348 = vmatprep.subr.mxu0 0.0
    %2349 = vmatpush1.xpose.msra.mxu0 0.0
    %2350 = vmatprep.subr.mxu0 0.0
    %2351 = vmatpush1.xpose.msra.mxu0 0.0
    %2352 = vmatprep.subr.mxu0 0.0
    %2353 = vmatpush1.xpose.msra.mxu0 0.0
    %2354 = vmatprep.subr.mxu0 0.0
    %2355 = vmatpush1.xpose.msra.mxu0 0.0
    %2356 = vmatprep.subr.mxu0 0.0
    %2357 = vmatpush1.xpose.msra.mxu0 0.0
    %2358 = vmatprep.subr.mxu0 0.0
    %2359 = vmatpush1.xpose.msra.mxu0 0.0
    %2360 = vmatprep.subr.mxu0 0.0
    %2361 = vmatpush1.xpose.msra.mxu0 0.0
    %2362 = vmatprep.subr.mxu0 0.0
    %2363 = vmatpush1.xpose.msra.mxu0 0.0
    %2364 = vmatprep.subr.mxu0 0.0
    %2365 = vmatpush1.xpose.msra.mxu0 0.0
    %2366 = vmatprep.subr.mxu0 0.0
    %2367 = vmatpush1.xpose.msra.mxu0 0.0
    %2368 = vmatprep.subr.mxu0 0.0
    %2369 = vmatpush1.xpose.msra.mxu0 0.0
    %2370 = vmatprep.subr.mxu0 0.0
    %2371 = vmatpush1.xpose.msra.mxu0 0.0
    %2372 = vmatprep.subr.mxu0 0.0
    %2373 = vmatpush1.xpose.msra.mxu0 0.0
    %2374 = vmatprep.subr.mxu0 0.0
    %2375 = vmatpush1.xpose.msra.mxu0 0.0
    %2376 = vmatprep.subr.mxu0 0.0
    %2377 = vmatpush1.xpose.msra.mxu0 0.0
    %2378 = vmatprep.subr.mxu0 0.0
    %2379 = vmatpush1.xpose.msra.mxu0 0.0
    %2380 = vmatprep.mubr.f32.mxu0 0.0
    %2381 = vmatmul.mubr.f32.gmra.mrb[0].mxu0 %v2311
    %v2382 = vpop.f32.mrb[0].mxu0
    %v2383 = vadd.f32 %v2308, %v2382
    %v2384 = vpop.f32.mrb[0].mxu0
    %2385 = vdwg.mxu0
    %vm2386 = vcmask 17408
    %2387 = vst.msk [vmem:[#allocation2] sm:$0x3] %vm2386, %v2383
    // Predicated region
    $region58: #{forward.1} parent=1 // pred_check
      _
    $region59: #{forward.1} parent=1 // pred_check_branch
      %2389 = sbr.rel (0) target = $region61
    $region60: #{forward.1} parent=1 // pred_region
      %s2391 = ssub.s32 32, 32
      %2392 = vsyncadd [#allocation3], %s2391
      %s2394 = sshll.u32 [#allocation2], 4
      %s2395 = int_to_ptr.vmem [resolvable:$true] %s2394
      %2397 = dma.vmem_to_hbm [thread:$0]  %s2395, 32, %s14, [#allocation3]
    $region61: #{forward.1} parent=1 // pred_fallthru
      _
    // Predicated region
    $region62: #{forward.1} parent=1 // pred_check
      _
    $region63: #{forward.1} parent=1 // pred_check_branch
      %2399 = sbr.rel (0) target = $region65
    $region64: #{forward.1} parent=1 // pred_region
      %2400 = dma.done [#allocation3], 32
    $region65: #{forward.1} parent=1 // pred_fallthru
      _
    %2401 = vsyncpa [#allocation3], 1

</llo_original>
